<compile_context>
chip_gen: v7x
topology: tpu7x:2x2x1
jax: 0.10.0
libtpu: 0.0.40
codegen_flags: <defaults>
</compile_context>

<pallas_src>
import jax
import jax.numpy as jnp
from jax import lax
from jax.experimental import pallas as pl
from jax.experimental.pallas import tpu as pltpu

C = 16           # channels fixed by the module (BT2 uses ConvBNRelu(16, 16))
EPS = 1e-5       # BatchNorm2d default eps
NUM_BLOCKS = 3   # Block2 = BT2, BT2, BT2


# ----------------------------- Pallas kernel --------------------------------
def block2_kernel(x_ref, w3_ref, b3_ref, w1_ref, b1_ref, out_ref):
    """Fused Block2 on `nb` images; activation stays resident in vregs/VMEM.

    x_ref:   (nb, H, W*C)          f32 lane-dense activations (one batch chunk)
    w3_ref:  (3, 3, W*C, W*C)      bf16 banded 3x3 weights, [blk, ky, in, out]
                                   row index = w_in*C + cin, col = w_out*C + cout
    b3_ref:  (3, 1, W*C)           f32 3x3 bias tiled over W
    w1_ref:  (3, W*C, W*C)         bf16 block-diagonal 1x1 weights
    b1_ref:  (3, 1, W*C)           f32 1x1 bias tiled over W
    out_ref: (nb, H, W*C)          f32
    """
    nb, H, WC = x_ref.shape
    m = nb * H

    act = x_ref[...]                                  # (nb, H, WC) f32

    # Hoisted constants (not re-materialized inside the unrolled block loop).
    zrow = jnp.zeros((nb, 1, WC), jnp.float32)

    for blk in range(NUM_BLOCKS):                     # static unroll (3)
        # Vertical +/-1 row shifts with zero boundary rows (== Conv2d pad=1
        # vertically).  f32 shifts are single-sublane moves; horizontal pad is
        # already encoded as missing bands in the banded weights.
        a_dn = jnp.concatenate([zrow, act[:, :H - 1, :]], axis=1)   # x[h-1]
        a_up = jnp.concatenate([act[:, 1:, :], zrow], axis=1)       # x[h+1]

        a_c16 = act.astype(jnp.bfloat16).reshape(m, WC)
        a_dn16 = a_dn.astype(jnp.bfloat16).reshape(m, WC)
        a_up16 = a_up.astype(jnp.bfloat16).reshape(m, WC)

        # ---- 3x3 conv: 3 full-width (M,256)x(256,256) MXU matmuls ----------
        h = (jnp.dot(a_dn16, w3_ref[blk, 0], preferred_element_type=jnp.float32)
             + jnp.dot(a_c16, w3_ref[blk, 1], preferred_element_type=jnp.float32)
             + jnp.dot(a_up16, w3_ref[blk, 2], preferred_element_type=jnp.float32))
        h = jnp.maximum(h + b3_ref[blk], 0.0)                       # (m, WC)

        # ---- 1x1 conv: one block-diagonal (M,256)x(256,256) matmul ---------
        h2 = jnp.dot(h.astype(jnp.bfloat16), w1_ref[blk],
                     preferred_element_type=jnp.float32)
        h2 = jnp.maximum(h2 + b1_ref[blk], 0.0)

        # ---- residual add ---------------------------------------------------
        act = act + h2.reshape(nb, H, WC)

    out_ref[...] = act                                # lane-dense, unmasked vst


def _choose_images_per_step(N, H):
    """Fold images into the matmul M dim, but keep >=2 grid steps when N>=2
    so both v7x TensorCores get work (no effect on single-TC v5e/v6e)."""
    target_rows = 128                                 # aim for M ~= 128
    nb = max(1, min(N if N < 2 else N // 2, max(1, target_rows // H)))
    while N % nb:                                     # keep the grid exact
        nb -= 1
    return nb


def block2_pallas(x, w3_all, b3_all, w1_all, b1_all, *, images_per_step=None):
    """x: (N, H, W, C) float32 NHWC. Returns (N, H, W, C)."""
    N, H, W, Cc = x.shape
    WC = W * Cc
    assert H % 8 == 0, "lane-dense layout assumes H multiple of 8"
    assert WC % 128 == 0, "lane-dense layout assumes W*C multiple of 128"

    nb = images_per_step if images_per_step is not None \
        else _choose_images_per_step(N, H)

    x2 = x.astype(jnp.float32).reshape(N, H, WC)      # lane-dense slab (wrapper-side)

    out = pl.pallas_call(
        block2_kernel,
        out_shape=jax.ShapeDtypeStruct((N, H, WC), jnp.float32),
        grid_spec=pltpu.PrefetchScalarGridSpec(
            num_scalar_prefetch=0,
            grid=(N // nb,),                          # batch chunks
            in_specs=[
                pl.BlockSpec((nb, H, WC), lambda n: (n, 0, 0)),
                # weights/biases: full arrays, constant block index -> staged once
                pl.BlockSpec((NUM_BLOCKS, 3, WC, WC), lambda n: (0, 0, 0, 0)),
                pl.BlockSpec((NUM_BLOCKS, 1, WC), lambda n: (0, 0, 0)),
                pl.BlockSpec((NUM_BLOCKS, WC, WC), lambda n: (0, 0, 0)),
                pl.BlockSpec((NUM_BLOCKS, 1, WC), lambda n: (0, 0, 0)),
            ],
            out_specs=pl.BlockSpec((nb, H, WC), lambda n: (n, 0, 0)),
        ),
        compiler_params=pltpu.CompilerParams(
            dimension_semantics=("parallel",),        # megacore over batch chunks
            vmem_limit_bytes=32 * 1024 * 1024,        # above v5e's 16 MiB default,
                                                      # within v7x's 64 MiB physical
        ),
    )(x2, w3_all, b3_all, w1_all, b1_all)
    return out.reshape(N, H, W, Cc)
    # TODO(synk): for H,W large enough that (nb,H,W*C) blocks stress VMEM,
    # add an H row-tile grid axis with a 1-row halo ('arbitrary' semantics).


def block2_pallas_nchw(x_nchw, packed):
    """PyTorch-layout adapter: NCHW in/out; kernel runs lane-dense internally."""
    x = jnp.transpose(x_nchw, (0, 2, 3, 1))           # NCHW -> NHWC
    y = block2_pallas(x, packed["w3"], packed["b3"], packed["w1"], packed["b1"])
    return jnp.transpose(y, (0, 3, 1, 2))             # NHWC -> NCHW


# ------------------------- parameter init / folding -------------------------
def init_convbnrelu(key, cin, cout, k):
    """Deterministic synthetic params matching nn.Conv2d + nn.BatchNorm2d."""
    k1, k2, k3, k4 = jax.random.split(key, 4)
    w = 0.1 * jax.random.normal(k1, (cout, cin, k, k), jnp.float32)   # OIHW
    b = 0.1 * jax.random.normal(k2, (cout,), jnp.float32)
    gamma = 1.0 + 0.1 * jax.random.normal(k3, (cout,), jnp.float32)
    beta = 0.1 * jax.random.normal(k4, (cout,), jnp.float32)
    mean = jnp.zeros((cout,), jnp.float32)   # BatchNorm2d default running stats
    var = jnp.ones((cout,), jnp.float32)
    return dict(w=w, b=b, gamma=gamma, beta=beta, mean=mean, var=var)


def fold_bn(p):
    """Fold inference-mode BatchNorm into the preceding conv."""
    scale = p["gamma"] / jnp.sqrt(p["var"] + EPS)          # (Cout,)
    eff_w = p["w"] * scale[:, None, None, None]            # OIHW
    eff_b = (p["b"] - p["mean"]) * scale + p["beta"]       # (Cout,)
    return eff_w, eff_b


def pack_3x3_banded(eff_w, Wdim):
    """OIHW (C,C,3,3) -> (3, W*C, W*C) banded matrices (one per ky).

    band[ky][w_in*C + ci, w_out*C + co] = eff_w[co, ci, ky, kx],
    kx = w_in - w_out + 1; out-of-range kx (horizontal padding) -> zero band.
    """
    Cc = eff_w.shape[0]
    bands = []
    for ky in range(3):
        B = jnp.zeros((Wdim * Cc, Wdim * Cc), jnp.float32)
        for kx in range(3):
            S = jnp.eye(Wdim, Wdim, k=(1 - kx), dtype=jnp.float32)  # w_out = w_in+1-kx
            M = eff_w[:, :, ky, kx].T                               # (cin, cout)
            B = B + jnp.kron(S, M)
        bands.append(B)
    return jnp.stack(bands)                                         # (3, WC, WC)


def pack_1x1_diag(eff_w, Wdim):
    """OIHW (C,C,1,1) -> block-diagonal (W*C, W*C)."""
    M = eff_w[:, :, 0, 0].T                                         # (cin, cout)
    return jnp.kron(jnp.eye(Wdim, dtype=jnp.float32), M)


def pack_bias_dense(eff_b, Wdim):
    return jnp.tile(eff_b, Wdim).reshape(1, Wdim * eff_b.shape[0])  # (1, W*C)


def init_block2_params(key, Wdim):
    blocks = []
    for _ in range(NUM_BLOCKS):
        kA, kB, key = jax.random.split(key, 3)
        p3 = init_convbnrelu(kA, C, C, 3)      # ConvBNRelu(16, 16, k=3, p=1)
        p1 = init_convbnrelu(kB, C, C, 1)      # ConvBNRelu(16, 16, k=1, p=0)
        w3, b3 = fold_bn(p3)
        w1, b1 = fold_bn(p1)
        blocks.append(dict(w3=w3, b3=b3, w1=w1, b1=b1))
    packed = dict(
        # bf16 MXU operands (f32 accumulation happens in the kernel)
        w3=jnp.stack([pack_3x3_banded(b["w3"], Wdim) for b in blocks]
                     ).astype(jnp.bfloat16),                        # (3,3,WC,WC)
        b3=jnp.stack([pack_bias_dense(b["b3"], Wdim) for b in blocks]),  # (3,1,WC)
        w1=jnp.stack([pack_1x1_diag(b["w1"], Wdim) for b in blocks]
                     ).astype(jnp.bfloat16),                        # (3,WC,WC)
        b1=jnp.stack([pack_bias_dense(b["b1"], Wdim) for b in blocks]),  # (3,1,WC)
    )
    return packed, blocks


# ------------------------------ pure-JAX reference ---------------------------
def ref_convbnrelu_nhwc(x, eff_w, eff_b, padding):
    w_hwio = jnp.transpose(eff_w, (2, 3, 1, 0))
    y = lax.conv_general_dilated(
        x, w_hwio, window_strides=(1, 1), padding=padding,
        dimension_numbers=("NHWC", "HWIO", "NHWC"),
        precision=lax.Precision.HIGHEST)
    return jnp.maximum(y + eff_b, 0.0)


def block2_ref_nchw(x_nchw, blocks):
    # Weights are rounded to bf16 (the exact values the kernel feeds the MXU)
    # so the comparison isolates kernel-structure errors; activations stay f32
    # here, so the remaining diff vs. the kernel is bf16 activation rounding.
    x = jnp.transpose(x_nchw, (0, 2, 3, 1))
    for b in blocks:
        w3 = b["w3"].astype(jnp.bfloat16).astype(jnp.float32)
        w1 = b["w1"].astype(jnp.bfloat16).astype(jnp.float32)
        h = ref_convbnrelu_nhwc(x, w3, b["b3"], ((1, 1), (1, 1)))
        h = ref_convbnrelu_nhwc(h, w1, b["b1"], ((0, 0), (0, 0)))
        x = x + h
    return jnp.transpose(x, (0, 3, 1, 2))


# ----------------------------------- main ------------------------------------
if __name__ == "__main__":
    key = jax.random.PRNGKey(0)
    kx_, kp = jax.random.split(key)

    N, H, W = 2, 16, 16
    x_nchw = jax.random.normal(kx_, (N, C, H, W), jnp.float32)   # PyTorch NCHW

    packed, blocks = init_block2_params(kp, W)

    fwd = jax.jit(lambda a: block2_pallas_nchw(a, packed))
    out = jax.block_until_ready(fwd(x_nchw))

    ref = jax.block_until_ready(block2_ref_nchw(x_nchw, blocks))

    assert out.shape == (N, C, H, W)
    # bf16 MXU inputs (f32 accumulation) across 6 convs + 3 residual adds:
    # tolerance widened from 1e-3 accordingly (review: "re-validate tolerance").
    assert jnp.allclose(out, ref, atol=2e-2, rtol=2e-2), "mismatch vs reference"

    print("KERNEL_OK")
</pallas_src>

<mosaic_0001>
module attributes {stable_mosaic.version = 11 : i64} {
  func.func @block2_kernel(%arg0: i32, %arg1: memref<1x16x256xf32, #tpu.memory_space<vmem>>, %arg2: memref<3x3x256x256xbf16, #tpu.memory_space<vmem>>, %arg3: memref<3x1x256xf32, #tpu.memory_space<vmem>>, %arg4: memref<3x256x256xbf16, #tpu.memory_space<vmem>>, %arg5: memref<3x1x256xf32, #tpu.memory_space<vmem>>, %arg6: memref<1x16x256xf32, #tpu.memory_space<vmem>>) attributes {dimension_semantics = [#tpu.dimension_semantics<parallel>], iteration_bounds = array<i64: 2>, scalar_prefetch = 0 : i64, scratch_operands = 0 : i64, tpu.core_type = #tpu.core_type<tc>, window_params = [{transform_indices = @transform_0, window_bounds = array<i64: 1, 16, 256>}, {pipeline_mode = #tpu.pipeline_mode<synchronous>, transform_indices = @transform_1, window_bounds = array<i64: 3, 3, 256, 256>}, {pipeline_mode = #tpu.pipeline_mode<synchronous>, transform_indices = @transform_2, window_bounds = array<i64: 3, 1, 256>}, {pipeline_mode = #tpu.pipeline_mode<synchronous>, transform_indices = @transform_3, window_bounds = array<i64: 3, 256, 256>}, {pipeline_mode = #tpu.pipeline_mode<synchronous>, transform_indices = @transform_4, window_bounds = array<i64: 3, 1, 256>}, {transform_indices = @transform_5, window_bounds = array<i64: 1, 16, 256>}]} {
    %c0 = arith.constant 0 : index
    %c0_0 = arith.constant 0 : index
    %c0_1 = arith.constant 0 : index
    %0 = vector.load %arg1[%c0, %c0_0, %c0_1] : memref<1x16x256xf32, #tpu.memory_space<vmem>>, vector<1x16x256xf32>
    %cst = arith.constant 0.000000e+00 : f32
    %1 = vector.broadcast %cst : f32 to vector<1x1x256xf32>
    %2 = vector.extract_strided_slice %0 {offsets = [0, 0, 0], sizes = [1, 15, 256], strides = [1, 1, 1]} : vector<1x16x256xf32> to vector<1x15x256xf32>
    %3 = tpu.concatenate %1, %2 in 1 : vector<1x1x256xf32>, vector<1x15x256xf32> -> vector<1x16x256xf32>
    %4 = vector.extract_strided_slice %0 {offsets = [0, 1, 0], sizes = [1, 15, 256], strides = [1, 1, 1]} : vector<1x16x256xf32> to vector<1x15x256xf32>
    %5 = tpu.concatenate %4, %1 in 1 : vector<1x15x256xf32>, vector<1x1x256xf32> -> vector<1x16x256xf32>
    %6 = arith.truncf %0 : vector<1x16x256xf32> to vector<1x16x256xbf16>
    %7 = vector.shape_cast %6 : vector<1x16x256xbf16> to vector<16x256xbf16>
    %8 = arith.truncf %3 : vector<1x16x256xf32> to vector<1x16x256xbf16>
    %9 = vector.shape_cast %8 : vector<1x16x256xbf16> to vector<16x256xbf16>
    %10 = arith.truncf %5 : vector<1x16x256xf32> to vector<1x16x256xbf16>
    %11 = vector.shape_cast %10 : vector<1x16x256xbf16> to vector<16x256xbf16>
    %c0_2 = arith.constant 0 : index
    %c0_3 = arith.constant 0 : index
    %c0_4 = arith.constant 0 : index
    %c0_5 = arith.constant 0 : index
    %12 = vector.load %arg2[%c0_2, %c0_3, %c0_4, %c0_5] : memref<3x3x256x256xbf16, #tpu.memory_space<vmem>>, vector<1x1x256x256xbf16>
    %13 = vector.shape_cast %12 : vector<1x1x256x256xbf16> to vector<256x256xbf16>
    %cst_6 = arith.constant dense<0.000000e+00> : vector<16x256xf32>
    %14 = tpu.matmul %9, %13, %cst_6 {dimension_numbers = #tpu.dot_dimension_numbers<[1], [0], [0], [1], [0, 0, 1, 1], [], []>} : vector<16x256xbf16>, vector<256x256xbf16>, vector<16x256xf32> -> vector<16x256xf32>
    %c0_7 = arith.constant 0 : index
    %c1 = arith.constant 1 : index
    %c0_8 = arith.constant 0 : index
    %c0_9 = arith.constant 0 : index
    %15 = vector.load %arg2[%c0_7, %c1, %c0_8, %c0_9] : memref<3x3x256x256xbf16, #tpu.memory_space<vmem>>, vector<1x1x256x256xbf16>
    %16 = vector.shape_cast %15 : vector<1x1x256x256xbf16> to vector<256x256xbf16>
    %cst_10 = arith.constant dense<0.000000e+00> : vector<16x256xf32>
    %17 = tpu.matmul %7, %16, %cst_10 {dimension_numbers = #tpu.dot_dimension_numbers<[1], [0], [0], [1], [0, 0, 1, 1], [], []>} : vector<16x256xbf16>, vector<256x256xbf16>, vector<16x256xf32> -> vector<16x256xf32>
    %18 = arith.addf %14, %17 : vector<16x256xf32>
    %c0_11 = arith.constant 0 : index
    %c2 = arith.constant 2 : index
    %c0_12 = arith.constant 0 : index
    %c0_13 = arith.constant 0 : index
    %19 = vector.load %arg2[%c0_11, %c2, %c0_12, %c0_13] : memref<3x3x256x256xbf16, #tpu.memory_space<vmem>>, vector<1x1x256x256xbf16>
    %20 = vector.shape_cast %19 : vector<1x1x256x256xbf16> to vector<256x256xbf16>
    %cst_14 = arith.constant dense<0.000000e+00> : vector<16x256xf32>
    %21 = tpu.matmul %11, %20, %cst_14 {dimension_numbers = #tpu.dot_dimension_numbers<[1], [0], [0], [1], [0, 0, 1, 1], [], []>} : vector<16x256xbf16>, vector<256x256xbf16>, vector<16x256xf32> -> vector<16x256xf32>
    %22 = arith.addf %18, %21 : vector<16x256xf32>
    %c0_15 = arith.constant 0 : index
    %c0_16 = arith.constant 0 : index
    %c0_17 = arith.constant 0 : index
    %23 = vector.load %arg3[%c0_15, %c0_16, %c0_17] : memref<3x1x256xf32, #tpu.memory_space<vmem>>, vector<1x1x256xf32>
    %24 = vector.shape_cast %23 : vector<1x1x256xf32> to vector<1x256xf32>
    %25 = vector.broadcast %24 : vector<1x256xf32> to vector<16x256xf32>
    %26 = arith.addf %22, %25 : vector<16x256xf32>
    %cst_18 = arith.constant 0.000000e+00 : f32
    %27 = vector.broadcast %cst_18 : f32 to vector<16x256xf32>
    %28 = arith.maximumf %26, %27 : vector<16x256xf32>
    %29 = arith.truncf %28 : vector<16x256xf32> to vector<16x256xbf16>
    %c0_19 = arith.constant 0 : index
    %c0_20 = arith.constant 0 : index
    %c0_21 = arith.constant 0 : index
    %30 = vector.load %arg4[%c0_19, %c0_20, %c0_21] : memref<3x256x256xbf16, #tpu.memory_space<vmem>>, vector<1x256x256xbf16>
    %31 = vector.shape_cast %30 : vector<1x256x256xbf16> to vector<256x256xbf16>
    %cst_22 = arith.constant dense<0.000000e+00> : vector<16x256xf32>
    %32 = tpu.matmul %29, %31, %cst_22 {dimension_numbers = #tpu.dot_dimension_numbers<[1], [0], [0], [1], [0, 0, 1, 1], [], []>} : vector<16x256xbf16>, vector<256x256xbf16>, vector<16x256xf32> -> vector<16x256xf32>
    %c0_23 = arith.constant 0 : index
    %c0_24 = arith.constant 0 : index
    %c0_25 = arith.constant 0 : index
    %33 = vector.load %arg5[%c0_23, %c0_24, %c0_25] : memref<3x1x256xf32, #tpu.memory_space<vmem>>, vector<1x1x256xf32>
    %34 = vector.shape_cast %33 : vector<1x1x256xf32> to vector<1x256xf32>
    %35 = vector.broadcast %34 : vector<1x256xf32> to vector<16x256xf32>
    %36 = arith.addf %32, %35 : vector<16x256xf32>
    %cst_26 = arith.constant 0.000000e+00 : f32
    %37 = vector.broadcast %cst_26 : f32 to vector<16x256xf32>
    %38 = arith.maximumf %36, %37 : vector<16x256xf32>
    %39 = vector.shape_cast %38 : vector<16x256xf32> to vector<1x16x256xf32>
    %40 = arith.addf %0, %39 : vector<1x16x256xf32>
    %41 = vector.extract_strided_slice %40 {offsets = [0, 0, 0], sizes = [1, 15, 256], strides = [1, 1, 1]} : vector<1x16x256xf32> to vector<1x15x256xf32>
    %42 = tpu.concatenate %1, %41 in 1 : vector<1x1x256xf32>, vector<1x15x256xf32> -> vector<1x16x256xf32>
    %43 = vector.extract_strided_slice %40 {offsets = [0, 1, 0], sizes = [1, 15, 256], strides = [1, 1, 1]} : vector<1x16x256xf32> to vector<1x15x256xf32>
    %44 = tpu.concatenate %43, %1 in 1 : vector<1x15x256xf32>, vector<1x1x256xf32> -> vector<1x16x256xf32>
    %45 = arith.truncf %40 : vector<1x16x256xf32> to vector<1x16x256xbf16>
    %46 = vector.shape_cast %45 : vector<1x16x256xbf16> to vector<16x256xbf16>
    %47 = arith.truncf %42 : vector<1x16x256xf32> to vector<1x16x256xbf16>
    %48 = vector.shape_cast %47 : vector<1x16x256xbf16> to vector<16x256xbf16>
    %49 = arith.truncf %44 : vector<1x16x256xf32> to vector<1x16x256xbf16>
    %50 = vector.shape_cast %49 : vector<1x16x256xbf16> to vector<16x256xbf16>
    %c1_27 = arith.constant 1 : index
    %c0_28 = arith.constant 0 : index
    %c0_29 = arith.constant 0 : index
    %c0_30 = arith.constant 0 : index
    %51 = vector.load %arg2[%c1_27, %c0_28, %c0_29, %c0_30] : memref<3x3x256x256xbf16, #tpu.memory_space<vmem>>, vector<1x1x256x256xbf16>
    %52 = vector.shape_cast %51 : vector<1x1x256x256xbf16> to vector<256x256xbf16>
    %cst_31 = arith.constant dense<0.000000e+00> : vector<16x256xf32>
    %53 = tpu.matmul %48, %52, %cst_31 {dimension_numbers = #tpu.dot_dimension_numbers<[1], [0], [0], [1], [0, 0, 1, 1], [], []>} : vector<16x256xbf16>, vector<256x256xbf16>, vector<16x256xf32> -> vector<16x256xf32>
    %c1_32 = arith.constant 1 : index
    %c1_33 = arith.constant 1 : index
    %c0_34 = arith.constant 0 : index
    %c0_35 = arith.constant 0 : index
    %54 = vector.load %arg2[%c1_32, %c1_33, %c0_34, %c0_35] : memref<3x3x256x256xbf16, #tpu.memory_space<vmem>>, vector<1x1x256x256xbf16>
    %55 = vector.shape_cast %54 : vector<1x1x256x256xbf16> to vector<256x256xbf16>
    %cst_36 = arith.constant dense<0.000000e+00> : vector<16x256xf32>
    %56 = tpu.matmul %46, %55, %cst_36 {dimension_numbers = #tpu.dot_dimension_numbers<[1], [0], [0], [1], [0, 0, 1, 1], [], []>} : vector<16x256xbf16>, vector<256x256xbf16>, vector<16x256xf32> -> vector<16x256xf32>
    %57 = arith.addf %53, %56 : vector<16x256xf32>
    %c1_37 = arith.constant 1 : index
    %c2_38 = arith.constant 2 : index
    %c0_39 = arith.constant 0 : index
    %c0_40 = arith.constant 0 : index
    %58 = vector.load %arg2[%c1_37, %c2_38, %c0_39, %c0_40] : memref<3x3x256x256xbf16, #tpu.memory_space<vmem>>, vector<1x1x256x256xbf16>
    %59 = vector.shape_cast %58 : vector<1x1x256x256xbf16> to vector<256x256xbf16>
    %cst_41 = arith.constant dense<0.000000e+00> : vector<16x256xf32>
    %60 = tpu.matmul %50, %59, %cst_41 {dimension_numbers = #tpu.dot_dimension_numbers<[1], [0], [0], [1], [0, 0, 1, 1], [], []>} : vector<16x256xbf16>, vector<256x256xbf16>, vector<16x256xf32> -> vector<16x256xf32>
    %61 = arith.addf %57, %60 : vector<16x256xf32>
    %c1_42 = arith.constant 1 : index
    %c0_43 = arith.constant 0 : index
    %c0_44 = arith.constant 0 : index
    %62 = vector.load %arg3[%c1_42, %c0_43, %c0_44] : memref<3x1x256xf32, #tpu.memory_space<vmem>>, vector<1x1x256xf32>
    %63 = vector.shape_cast %62 : vector<1x1x256xf32> to vector<1x256xf32>
    %64 = vector.broadcast %63 : vector<1x256xf32> to vector<16x256xf32>
    %65 = arith.addf %61, %64 : vector<16x256xf32>
    %cst_45 = arith.constant 0.000000e+00 : f32
    %66 = vector.broadcast %cst_45 : f32 to vector<16x256xf32>
    %67 = arith.maximumf %65, %66 : vector<16x256xf32>
    %68 = arith.truncf %67 : vector<16x256xf32> to vector<16x256xbf16>
    %c1_46 = arith.constant 1 : index
    %c0_47 = arith.constant 0 : index
    %c0_48 = arith.constant 0 : index
    %69 = vector.load %arg4[%c1_46, %c0_47, %c0_48] : memref<3x256x256xbf16, #tpu.memory_space<vmem>>, vector<1x256x256xbf16>
    %70 = vector.shape_cast %69 : vector<1x256x256xbf16> to vector<256x256xbf16>
    %cst_49 = arith.constant dense<0.000000e+00> : vector<16x256xf32>
    %71 = tpu.matmul %68, %70, %cst_49 {dimension_numbers = #tpu.dot_dimension_numbers<[1], [0], [0], [1], [0, 0, 1, 1], [], []>} : vector<16x256xbf16>, vector<256x256xbf16>, vector<16x256xf32> -> vector<16x256xf32>
    %c1_50 = arith.constant 1 : index
    %c0_51 = arith.constant 0 : index
    %c0_52 = arith.constant 0 : index
    %72 = vector.load %arg5[%c1_50, %c0_51, %c0_52] : memref<3x1x256xf32, #tpu.memory_space<vmem>>, vector<1x1x256xf32>
    %73 = vector.shape_cast %72 : vector<1x1x256xf32> to vector<1x256xf32>
    %74 = vector.broadcast %73 : vector<1x256xf32> to vector<16x256xf32>
    %75 = arith.addf %71, %74 : vector<16x256xf32>
    %cst_53 = arith.constant 0.000000e+00 : f32
    %76 = vector.broadcast %cst_53 : f32 to vector<16x256xf32>
    %77 = arith.maximumf %75, %76 : vector<16x256xf32>
    %78 = vector.shape_cast %77 : vector<16x256xf32> to vector<1x16x256xf32>
    %79 = arith.addf %40, %78 : vector<1x16x256xf32>
    %80 = vector.extract_strided_slice %79 {offsets = [0, 0, 0], sizes = [1, 15, 256], strides = [1, 1, 1]} : vector<1x16x256xf32> to vector<1x15x256xf32>
    %81 = tpu.concatenate %1, %80 in 1 : vector<1x1x256xf32>, vector<1x15x256xf32> -> vector<1x16x256xf32>
    %82 = vector.extract_strided_slice %79 {offsets = [0, 1, 0], sizes = [1, 15, 256], strides = [1, 1, 1]} : vector<1x16x256xf32> to vector<1x15x256xf32>
    %83 = tpu.concatenate %82, %1 in 1 : vector<1x15x256xf32>, vector<1x1x256xf32> -> vector<1x16x256xf32>
    %84 = arith.truncf %79 : vector<1x16x256xf32> to vector<1x16x256xbf16>
    %85 = vector.shape_cast %84 : vector<1x16x256xbf16> to vector<16x256xbf16>
    %86 = arith.truncf %81 : vector<1x16x256xf32> to vector<1x16x256xbf16>
    %87 = vector.shape_cast %86 : vector<1x16x256xbf16> to vector<16x256xbf16>
    %88 = arith.truncf %83 : vector<1x16x256xf32> to vector<1x16x256xbf16>
    %89 = vector.shape_cast %88 : vector<1x16x256xbf16> to vector<16x256xbf16>
    %c2_54 = arith.constant 2 : index
    %c0_55 = arith.constant 0 : index
    %c0_56 = arith.constant 0 : index
    %c0_57 = arith.constant 0 : index
    %90 = vector.load %arg2[%c2_54, %c0_55, %c0_56, %c0_57] : memref<3x3x256x256xbf16, #tpu.memory_space<vmem>>, vector<1x1x256x256xbf16>
    %91 = vector.shape_cast %90 : vector<1x1x256x256xbf16> to vector<256x256xbf16>
    %cst_58 = arith.constant dense<0.000000e+00> : vector<16x256xf32>
    %92 = tpu.matmul %87, %91, %cst_58 {dimension_numbers = #tpu.dot_dimension_numbers<[1], [0], [0], [1], [0, 0, 1, 1], [], []>} : vector<16x256xbf16>, vector<256x256xbf16>, vector<16x256xf32> -> vector<16x256xf32>
    %c2_59 = arith.constant 2 : index
    %c1_60 = arith.constant 1 : index
    %c0_61 = arith.constant 0 : index
    %c0_62 = arith.constant 0 : index
    %93 = vector.load %arg2[%c2_59, %c1_60, %c0_61, %c0_62] : memref<3x3x256x256xbf16, #tpu.memory_space<vmem>>, vector<1x1x256x256xbf16>
    %94 = vector.shape_cast %93 : vector<1x1x256x256xbf16> to vector<256x256xbf16>
    %cst_63 = arith.constant dense<0.000000e+00> : vector<16x256xf32>
    %95 = tpu.matmul %85, %94, %cst_63 {dimension_numbers = #tpu.dot_dimension_numbers<[1], [0], [0], [1], [0, 0, 1, 1], [], []>} : vector<16x256xbf16>, vector<256x256xbf16>, vector<16x256xf32> -> vector<16x256xf32>
    %96 = arith.addf %92, %95 : vector<16x256xf32>
    %c2_64 = arith.constant 2 : index
    %c2_65 = arith.constant 2 : index
    %c0_66 = arith.constant 0 : index
    %c0_67 = arith.constant 0 : index
    %97 = vector.load %arg2[%c2_64, %c2_65, %c0_66, %c0_67] : memref<3x3x256x256xbf16, #tpu.memory_space<vmem>>, vector<1x1x256x256xbf16>
    %98 = vector.shape_cast %97 : vector<1x1x256x256xbf16> to vector<256x256xbf16>
    %cst_68 = arith.constant dense<0.000000e+00> : vector<16x256xf32>
    %99 = tpu.matmul %89, %98, %cst_68 {dimension_numbers = #tpu.dot_dimension_numbers<[1], [0], [0], [1], [0, 0, 1, 1], [], []>} : vector<16x256xbf16>, vector<256x256xbf16>, vector<16x256xf32> -> vector<16x256xf32>
    %100 = arith.addf %96, %99 : vector<16x256xf32>
    %c2_69 = arith.constant 2 : index
    %c0_70 = arith.constant 0 : index
    %c0_71 = arith.constant 0 : index
    %101 = vector.load %arg3[%c2_69, %c0_70, %c0_71] : memref<3x1x256xf32, #tpu.memory_space<vmem>>, vector<1x1x256xf32>
    %102 = vector.shape_cast %101 : vector<1x1x256xf32> to vector<1x256xf32>
    %103 = vector.broadcast %102 : vector<1x256xf32> to vector<16x256xf32>
    %104 = arith.addf %100, %103 : vector<16x256xf32>
    %cst_72 = arith.constant 0.000000e+00 : f32
    %105 = vector.broadcast %cst_72 : f32 to vector<16x256xf32>
    %106 = arith.maximumf %104, %105 : vector<16x256xf32>
    %107 = arith.truncf %106 : vector<16x256xf32> to vector<16x256xbf16>
    %c2_73 = arith.constant 2 : index
    %c0_74 = arith.constant 0 : index
    %c0_75 = arith.constant 0 : index
    %108 = vector.load %arg4[%c2_73, %c0_74, %c0_75] : memref<3x256x256xbf16, #tpu.memory_space<vmem>>, vector<1x256x256xbf16>
    %109 = vector.shape_cast %108 : vector<1x256x256xbf16> to vector<256x256xbf16>
    %cst_76 = arith.constant dense<0.000000e+00> : vector<16x256xf32>
    %110 = tpu.matmul %107, %109, %cst_76 {dimension_numbers = #tpu.dot_dimension_numbers<[1], [0], [0], [1], [0, 0, 1, 1], [], []>} : vector<16x256xbf16>, vector<256x256xbf16>, vector<16x256xf32> -> vector<16x256xf32>
    %c2_77 = arith.constant 2 : index
    %c0_78 = arith.constant 0 : index
    %c0_79 = arith.constant 0 : index
    %111 = vector.load %arg5[%c2_77, %c0_78, %c0_79] : memref<3x1x256xf32, #tpu.memory_space<vmem>>, vector<1x1x256xf32>
    %112 = vector.shape_cast %111 : vector<1x1x256xf32> to vector<1x256xf32>
    %113 = vector.broadcast %112 : vector<1x256xf32> to vector<16x256xf32>
    %114 = arith.addf %110, %113 : vector<16x256xf32>
    %cst_80 = arith.constant 0.000000e+00 : f32
    %115 = vector.broadcast %cst_80 : f32 to vector<16x256xf32>
    %116 = arith.maximumf %114, %115 : vector<16x256xf32>
    %117 = vector.shape_cast %116 : vector<16x256xf32> to vector<1x16x256xf32>
    %118 = arith.addf %79, %117 : vector<1x16x256xf32>
    %c0_81 = arith.constant 0 : index
    %c0_82 = arith.constant 0 : index
    %c0_83 = arith.constant 0 : index
    %119 = vector.load %arg6[%c0_81, %c0_82, %c0_83] : memref<1x16x256xf32, #tpu.memory_space<vmem>>, vector<1x16x256xf32>
    tpu.vector_store %arg6[%c0_81, %c0_82, %c0_83], %118 {strides = array<i32>} : memref<1x16x256xf32, #tpu.memory_space<vmem>>, vector<1x16x256xf32>,
    return
  }
  func.func @transform_0(%arg0: i32) -> (i32, i32, i32) {
    %c0_i32 = arith.constant 0 : i32
    %c0_i32_0 = arith.constant 0 : i32
    %c0_i32_1 = arith.constant 0 : i32
    return %arg0, %c0_i32, %c0_i32_0 : i32, i32, i32
  }
  func.func @transform_1(%arg0: i32) -> (i32, i32, i32, i32) {
    %c0_i32 = arith.constant 0 : i32
    %c0_i32_0 = arith.constant 0 : i32
    %c0_i32_1 = arith.constant 0 : i32
    %c0_i32_2 = arith.constant 0 : i32
    %c0_i32_3 = arith.constant 0 : i32
    return %c0_i32, %c0_i32_0, %c0_i32_1, %c0_i32_2 : i32, i32, i32, i32
  }
  func.func @transform_2(%arg0: i32) -> (i32, i32, i32) {
    %c0_i32 = arith.constant 0 : i32
    %c0_i32_0 = arith.constant 0 : i32
    %c0_i32_1 = arith.constant 0 : i32
    %c0_i32_2 = arith.constant 0 : i32
    return %c0_i32, %c0_i32_0, %c0_i32_1 : i32, i32, i32
  }
  func.func @transform_3(%arg0: i32) -> (i32, i32, i32) {
    %c0_i32 = arith.constant 0 : i32
    %c0_i32_0 = arith.constant 0 : i32
    %c0_i32_1 = arith.constant 0 : i32
    %c0_i32_2 = arith.constant 0 : i32
    return %c0_i32, %c0_i32_0, %c0_i32_1 : i32, i32, i32
  }
  func.func @transform_4(%arg0: i32) -> (i32, i32, i32) {
    %c0_i32 = arith.constant 0 : i32
    %c0_i32_0 = arith.constant 0 : i32
    %c0_i32_1 = arith.constant 0 : i32
    %c0_i32_2 = arith.constant 0 : i32
    return %c0_i32, %c0_i32_0, %c0_i32_1 : i32, i32, i32
  }
  func.func @transform_5(%arg0: i32) -> (i32, i32, i32) {
    %c0_i32 = arith.constant 0 : i32
    %c0_i32_0 = arith.constant 0 : i32
    %c0_i32_1 = arith.constant 0 : i32
    return %arg0, %c0_i32, %c0_i32_0 : i32, i32, i32
  }
}

</mosaic_0001>

<llo_original>
// kernel: _lambda_.1
$region0: #{_lambda_.1}
  #allocation0 [shape = 'u32[]', space=smem, size = 0x4, offset = 0x4, fixed_abs, tag = 'smem constant byte address 0x4 - core index']
  #allocation1 [shape = 'u32[144,128]{1,0:T(1,128)}', space=vmem, size = 0x12000, scoped, tag = 'internal scratch']
  %s0 = inlined_call_operand.vmem [shape: f32[2,16,256], index: 0, kind: input, shape index: {}]
  %s1 = inlined_call_operand.vmem [shape: bf16[3,3,256,256], index: 1, kind: input, shape index: {}]
  %s2 = inlined_call_operand.vmem [shape: f32[3,1,256], index: 2, kind: input, shape index: {}]
  %s3 = inlined_call_operand.vmem [shape: bf16[3,256,256], index: 3, kind: input, shape index: {}]
  %s4 = inlined_call_operand.vmem [shape: f32[3,1,256], index: 4, kind: input, shape index: {}]
  %s5 = inlined_call_operand.vmem [shape: f32[2,16,256], index: 5, kind: output, shape index: {}]
  %s6 = sld [smem:[#allocation0]]
  $region53: #{_lambda_.1} parent=0
    _
  %s8 = ssub.s32 1, %s6
  %s9 = scalar_select 0, %s8, %s6
  loop: start=0, step=1, limit=4
  $region2: #{_lambda_.1} parent=0 // loop_pre_header
    _
  $region3: #{_lambda_.1} parent=0 // loop_header
    %s11 = sphi 0, %s15
    %p12 = scmp.ge.s32.totalorder %s11, 4
    %s21 = sphi 0, %s23
    %s24 = sphi 0, %s21
    %s25 = sphi 0, %s24
    %s41 = sphi 0, %s25
    %s45 = sphi 0, %s45
    %s47 = sphi 0, %s45
    %s48 = sphi 0, %s47
    %s62 = sphi 0, %s48
    %s66 = sphi 0, %s66
    %s68 = sphi 0, %s66
    %s69 = sphi 0, %s68
    %s83 = sphi 0, %s69
    %s87 = sphi 0, %s87
    %s89 = sphi 0, %s87
    %s90 = sphi 0, %s89
    %s104 = sphi 0, %s90
    %s108 = sphi 0, %s108
    %s110 = sphi 0, %s108
    %s111 = sphi 0, %s110
    %s125 = sphi 0, %s111
    %s131 = sphi 0, %s133
    %s134 = sphi 0, %s131
    %s135 = sphi 0, %s134
    %s151 = sphi 0, %s135
  $region4: #{_lambda_.1} parent=0 // loop_header_branch
    %14 = sbr.rel (%p12) target = $region8
  $region5: #{_lambda_.1} parent=0 // loop_body
    %s16 = ssub.s32 %s11, 1
    %s17 = ssub.s32 %s11, 2
    %s18 = sadd.s32 %s11, 1
    %s19 = ssub.s32 %s11, %s18
    %p20 = scmp.eq.s32.totalorder %s19, 0
    %s22 = sadd.s32 %s21, 1
    %s23 = scalar_select %p20, %s21, %s22
    %p26 = pneg %p20
    %p27 = scmp.eq.s32.totalorder %s11, 1
    %p28 = por %p26, %p27
    %p29 = scmp.ne.s32.totalorder %s21, %s24
    %p30 = scmp.eq.s32.totalorder %s11, 0
    %p31 = por %p29, %p30
    %p32 = scmp.ne.s32.totalorder %s21, %s24
    %p33 = scmp.eq.s32.totalorder %s16, 1
    %p34 = por %p32, %p33
    %p35 = scmp.ne.s32.totalorder %s24, %s25
    %p36 = scmp.eq.s32.totalorder %s16, 0
    %p37 = por %p35, %p36
    %p38 = scmp.ne.s32.totalorder %s24, %s25
    %p39 = scmp.eq.s32.totalorder %s17, 1
    %p40 = por %p38, %p39
    %p42 = scmp.ne.s32.totalorder %s25, %s41
    %p43 = scmp.eq.s32.totalorder %s17, 0
    %p44 = por %p42, %p43
    %s46 = sadd.s32 %s45, 1
    %p49 = scmp.eq.s32.totalorder %s11, 1
    %p50 = scmp.ne.s32.totalorder %s45, %s47
    %p51 = scmp.eq.s32.totalorder %s11, 0
    %p52 = por %p50, %p51
    %p53 = scmp.ne.s32.totalorder %s45, %s47
    %p54 = scmp.eq.s32.totalorder %s16, 1
    %p55 = por %p53, %p54
    %p56 = scmp.ne.s32.totalorder %s47, %s48
    %p57 = scmp.eq.s32.totalorder %s16, 0
    %p58 = por %p56, %p57
    %p59 = scmp.ne.s32.totalorder %s47, %s48
    %p60 = scmp.eq.s32.totalorder %s17, 1
    %p61 = por %p59, %p60
    %p63 = scmp.ne.s32.totalorder %s48, %s62
    %p64 = scmp.eq.s32.totalorder %s17, 0
    %p65 = por %p63, %p64
    %s67 = sadd.s32 %s66, 1
    %p70 = scmp.eq.s32.totalorder %s11, 1
    %p71 = scmp.ne.s32.totalorder %s66, %s68
    %p72 = scmp.eq.s32.totalorder %s11, 0
    %p73 = por %p71, %p72
    %p74 = scmp.ne.s32.totalorder %s66, %s68
    %p75 = scmp.eq.s32.totalorder %s16, 1
    %p76 = por %p74, %p75
    %p77 = scmp.ne.s32.totalorder %s68, %s69
    %p78 = scmp.eq.s32.totalorder %s16, 0
    %p79 = por %p77, %p78
    %p80 = scmp.ne.s32.totalorder %s68, %s69
    %p81 = scmp.eq.s32.totalorder %s17, 1
    %p82 = por %p80, %p81
    %p84 = scmp.ne.s32.totalorder %s69, %s83
    %p85 = scmp.eq.s32.totalorder %s17, 0
    %p86 = por %p84, %p85
    %s88 = sadd.s32 %s87, 1
    %p91 = scmp.eq.s32.totalorder %s11, 1
    %p92 = scmp.ne.s32.totalorder %s87, %s89
    %p93 = scmp.eq.s32.totalorder %s11, 0
    %p94 = por %p92, %p93
    %p95 = scmp.ne.s32.totalorder %s87, %s89
    %p96 = scmp.eq.s32.totalorder %s16, 1
    %p97 = por %p95, %p96
    %p98 = scmp.ne.s32.totalorder %s89, %s90
    %p99 = scmp.eq.s32.totalorder %s16, 0
    %p100 = por %p98, %p99
    %p101 = scmp.ne.s32.totalorder %s89, %s90
    %p102 = scmp.eq.s32.totalorder %s17, 1
    %p103 = por %p101, %p102
    %p105 = scmp.ne.s32.totalorder %s90, %s104
    %p106 = scmp.eq.s32.totalorder %s17, 0
    %p107 = por %p105, %p106
    %s109 = sadd.s32 %s108, 1
    %p112 = scmp.eq.s32.totalorder %s11, 1
    %p113 = scmp.ne.s32.totalorder %s108, %s110
    %p114 = scmp.eq.s32.totalorder %s11, 0
    %p115 = por %p113, %p114
    %p116 = scmp.ne.s32.totalorder %s108, %s110
    %p117 = scmp.eq.s32.totalorder %s16, 1
    %p118 = por %p116, %p117
    %p119 = scmp.ne.s32.totalorder %s110, %s111
    %p120 = scmp.eq.s32.totalorder %s16, 0
    %p121 = por %p119, %p120
    %p122 = scmp.ne.s32.totalorder %s110, %s111
    %p123 = scmp.eq.s32.totalorder %s17, 1
    %p124 = por %p122, %p123
    %p126 = scmp.ne.s32.totalorder %s111, %s125
    %p127 = scmp.eq.s32.totalorder %s17, 0
    %p128 = por %p126, %p127
    %s129 = ssub.s32 %s11, %s18
    %p130 = scmp.eq.s32.totalorder %s129, 0
    %s132 = sadd.s32 %s131, 1
    %s133 = scalar_select %p130, %s131, %s132
    %p136 = pneg %p130
    %p137 = scmp.eq.s32.totalorder %s11, 1
    %p138 = por %p136, %p137
    %p139 = scmp.ne.s32.totalorder %s131, %s134
    %p140 = scmp.eq.s32.totalorder %s11, 0
    %p141 = por %p139, %p140
    %p142 = scmp.ne.s32.totalorder %s131, %s134
    %p143 = scmp.eq.s32.totalorder %s16, 1
    %p144 = por %p142, %p143
    %p145 = scmp.ne.s32.totalorder %s134, %s135
    %p146 = scmp.eq.s32.totalorder %s16, 0
    %p147 = por %p145, %p146
    %p148 = scmp.ne.s32.totalorder %s134, %s135
    %p149 = scmp.eq.s32.totalorder %s17, 1
    %p150 = por %p148, %p149
    %p152 = scmp.ne.s32.totalorder %s135, %s151
    %p153 = scmp.eq.s32.totalorder %s17, 0
    %p154 = por %p152, %p153
    %p155 = scmp.le.s32.totalorder 1, %s11
    %p156 = scmp.lt.s32.totalorder %s11, 3
    %p157 = pnand %p155, %p156
    %p158 = pneg %p157
    // Predicated region
    $region9: #{_lambda_.1} parent=5 // pred_check
      _
    $region10: #{_lambda_.1} parent=5 // pred_check_branch
      %160 = sbr.rel (%p157) target = $region12
    $region11: #{_lambda_.1} parent=5 // pred_region
      %s161 = ssub.s32 %s11, 1
      // Predicated region
      $region13: #{_lambda_.1} parent=11 // pred_check
        %p162 = pneg %p58
      $region14: #{_lambda_.1} parent=11 // pred_check_branch
        %164 = sbr.rel (%p162) target = $region16
      $region15: #{_lambda_.1} parent=11 // pred_region
        _
      $region16: #{_lambda_.1} parent=11 // pred_fallthru
        _
      // Predicated region
      $region17: #{_lambda_.1} parent=11 // pred_check
        %p165 = pneg %p79
      $region18: #{_lambda_.1} parent=11 // pred_check_branch
        %167 = sbr.rel (%p165) target = $region20
      $region19: #{_lambda_.1} parent=11 // pred_region
        _
      $region20: #{_lambda_.1} parent=11 // pred_fallthru
        _
      // Predicated region
      $region21: #{_lambda_.1} parent=11 // pred_check
        %p168 = pneg %p100
      $region22: #{_lambda_.1} parent=11 // pred_check_branch
        %170 = sbr.rel (%p168) target = $region24
      $region23: #{_lambda_.1} parent=11 // pred_region
        _
      $region24: #{_lambda_.1} parent=11 // pred_fallthru
        _
      // Predicated region
      $region25: #{_lambda_.1} parent=11 // pred_check
        %p171 = pneg %p121
      $region26: #{_lambda_.1} parent=11 // pred_check_branch
        %173 = sbr.rel (%p171) target = $region28
      $region27: #{_lambda_.1} parent=11 // pred_region
        _
      $region28: #{_lambda_.1} parent=11 // pred_fallthru
        _
    $region12: #{_lambda_.1} parent=5 // pred_fallthru
      _
    %p174 = scmp.lt.s32.totalorder %s11, 2
    // Predicated region
    $region29: #{_lambda_.1} parent=5 // pred_check
      %p175 = pneg %p174
    $region30: #{_lambda_.1} parent=5 // pred_check_branch
      %177 = sbr.rel (%p175) target = $region32
    $region31: #{_lambda_.1} parent=5 // pred_region
      // Predicated region
      $region33: #{_lambda_.1} parent=31 // pred_check
        %p178 = pneg %p31
      $region34: #{_lambda_.1} parent=31 // pred_check_branch
        %180 = sbr.rel (%p178) target = $region36
      $region35: #{_lambda_.1} parent=31 // pred_region
        %p181 = scmp.lt.s32.totalorder %s11, 1
        %s182 = scalar_select %p181, %s11, 1
        %s183 = smul.addr %s182, 4
        %s184 = smul.addr %s183, 8
        %s185 = scalar_lea.vmem %s0, %s184
      $region36: #{_lambda_.1} parent=31 // pred_fallthru
        _
    $region32: #{_lambda_.1} parent=5 // pred_fallthru
      _
    %p186 = scmp.le.s32.totalorder 1, %s11
    %p187 = scmp.lt.s32.totalorder %s11, 3
    %p188 = pnand %p186, %p187
    %p189 = pneg %p188
    // Predicated region
    $region37: #{_lambda_.1} parent=5 // pred_check
      _
    $region38: #{_lambda_.1} parent=5 // pred_check_branch
      %191 = sbr.rel (%p188) target = $region40
    $region39: #{_lambda_.1} parent=5 // pred_region
      %s192 = ssub.s32 %s11, 1
      %p193 = scmp.lt.s32.totalorder %s16, 1
      %s194 = scalar_select %p193, %s16, 1
      %s195 = smul.addr %s194, 4
      %s196 = smul.addr %s195, 8
      %s197 = scalar_lea.vmem %s0, %s196
      %p198 = pneg %p37
      %p199 = pneg %p34
      %p200 = pneg %p58
      %p201 = pneg %p55
      %p202 = pneg %p79
      %p203 = pneg %p76
      %p204 = pneg %p100
      %p205 = pneg %p97
      %p206 = pneg %p121
      %p207 = pneg %p118
      %p208 = pneg %p147
      %p209 = pneg %p144
      %p210 = scmp.lt.s32.totalorder %s16, 1
      %s211 = scalar_select %p210, %s16, 1
      %s212 = smul.addr %s211, 4
      %s213 = smul.addr %s212, 8
      %s214 = scalar_lea.vmem %s5, %s213
      %p215 = scmp.lt.s32.totalorder %s16, 1
      %s216 = scalar_select %p215, %s16, 1
      %s217 = smul.addr %s216, 4
      %s218 = smul.addr %s217, 8
      %s219 = scalar_lea.vmem %s0, %s218
      %p220 = scmp.lt.s32.totalorder %s16, 1
      %s221 = scalar_select %p220, %s16, 1
      %s222 = smul.addr %s221, 4
      %s223 = smul.addr %s222, 8
      %s224 = scalar_lea.vmem %s5, %s223
      %v225 = vld [vmem:[%s219] sm:$0xff]
      %v226 = vld [vmem:[%s219 + $0x8] sm:$0xff]
      %v227 = vld [vmem:[%s219 + $0x10] sm:$0xff]
      %v228 = vld [vmem:[%s219 + $0x18] sm:$0xff]
      %vm233 = vcmask 1040384
      %v234 = vrot.slane %v225, 7
      %v235 = vrot.slane %v226, 7
      %v236 = vrot.slane %v227, 7
      %v237 = vsel %vm233, %v234, %v236
      %v238 = vrot.slane %v228, 7
      %v239 = vsel %vm233, %v235, %v238
      %v244 = vsel %vm233, 0.0, %v234
      %v245 = vsel %vm233, 0.0, %v235
      %vm246 = vcmask 1046528
      %v247 = vrot.slane %v225, 1
      %v248 = vrot.slane %v227, 1
      %v249 = vsel %vm246, %v247, %v248
      %v250 = vrot.slane %v226, 1
      %v251 = vrot.slane %v228, 1
      %v252 = vsel %vm246, %v250, %v251
      %v257 = vsel %vm246, %v248, 0.0
      %v258 = vsel %vm246, %v251, 0.0
      %v259 = vpack.c.bf16 %v227, %v225
      %v260 = vpack.c.bf16 %v228, %v226
      %v261 = vpack.c.bf16 %v237, %v244
      %v262 = vpack.c.bf16 %v239, %v245
      %v263 = vpack.c.bf16 %v257, %v249
      %v264 = vpack.c.bf16 %v258, %v252
      %v265 = vld [vmem:[%s1] sm:$0xff]
      %v266 = vld [vmem:[%s1 + $0x8] sm:$0xff]
      %v267 = vld [vmem:[%s1 + $0x10] sm:$0xff]
      %v268 = vld [vmem:[%s1 + $0x18] sm:$0xff]
      %v269 = vld [vmem:[%s1 + $0x20] sm:$0xff]
      %v270 = vld [vmem:[%s1 + $0x28] sm:$0xff]
      %v271 = vld [vmem:[%s1 + $0x30] sm:$0xff]
      %v272 = vld [vmem:[%s1 + $0x38] sm:$0xff]
      %v273 = vld [vmem:[%s1 + $0x40] sm:$0xff]
      %v274 = vld [vmem:[%s1 + $0x48] sm:$0xff]
      %v275 = vld [vmem:[%s1 + $0x50] sm:$0xff]
      %v276 = vld [vmem:[%s1 + $0x58] sm:$0xff]
      %v277 = vld [vmem:[%s1 + $0x60] sm:$0xff]
      %v278 = vld [vmem:[%s1 + $0x68] sm:$0xff]
      %v279 = vld [vmem:[%s1 + $0x70] sm:$0xff]
      %v280 = vld [vmem:[%s1 + $0x78] sm:$0xff]
      %v281 = vld [vmem:[%s1 + $0x80] sm:$0xff]
      %v282 = vld [vmem:[%s1 + $0x88] sm:$0xff]
      %v283 = vld [vmem:[%s1 + $0x90] sm:$0xff]
      %v284 = vld [vmem:[%s1 + $0x98] sm:$0xff]
      %v285 = vld [vmem:[%s1 + $0xa0] sm:$0xff]
      %v286 = vld [vmem:[%s1 + $0xa8] sm:$0xff]
      %v287 = vld [vmem:[%s1 + $0xb0] sm:$0xff]
      %v288 = vld [vmem:[%s1 + $0xb8] sm:$0xff]
      %v289 = vld [vmem:[%s1 + $0xc0] sm:$0xff]
      %v290 = vld [vmem:[%s1 + $0xc8] sm:$0xff]
      %v291 = vld [vmem:[%s1 + $0xd0] sm:$0xff]
      %v292 = vld [vmem:[%s1 + $0xd8] sm:$0xff]
      %v293 = vld [vmem:[%s1 + $0xe0] sm:$0xff]
      %v294 = vld [vmem:[%s1 + $0xe8] sm:$0xff]
      %v295 = vld [vmem:[%s1 + $0xf0] sm:$0xff]
      %v296 = vld [vmem:[%s1 + $0xf8] sm:$0xff]
      %s297 = scalar_lea.vmem %s1, 256
      %v298 = vld [vmem:[%s297] sm:$0xff]
      %v299 = vld [vmem:[%s297 + $0x8] sm:$0xff]
      %v300 = vld [vmem:[%s297 + $0x10] sm:$0xff]
      %v301 = vld [vmem:[%s297 + $0x18] sm:$0xff]
      %v302 = vld [vmem:[%s297 + $0x20] sm:$0xff]
      %v303 = vld [vmem:[%s297 + $0x28] sm:$0xff]
      %v304 = vld [vmem:[%s297 + $0x30] sm:$0xff]
      %v305 = vld [vmem:[%s297 + $0x38] sm:$0xff]
      %v306 = vld [vmem:[%s297 + $0x40] sm:$0xff]
      %v307 = vld [vmem:[%s297 + $0x48] sm:$0xff]
      %v308 = vld [vmem:[%s297 + $0x50] sm:$0xff]
      %v309 = vld [vmem:[%s297 + $0x58] sm:$0xff]
      %v310 = vld [vmem:[%s297 + $0x60] sm:$0xff]
      %v311 = vld [vmem:[%s297 + $0x68] sm:$0xff]
      %v312 = vld [vmem:[%s297 + $0x70] sm:$0xff]
      %v313 = vld [vmem:[%s297 + $0x78] sm:$0xff]
      %v314 = vld [vmem:[%s297 + $0x80] sm:$0xff]
      %v315 = vld [vmem:[%s297 + $0x88] sm:$0xff]
      %v316 = vld [vmem:[%s297 + $0x90] sm:$0xff]
      %v317 = vld [vmem:[%s297 + $0x98] sm:$0xff]
      %v318 = vld [vmem:[%s297 + $0xa0] sm:$0xff]
      %v319 = vld [vmem:[%s297 + $0xa8] sm:$0xff]
      %v320 = vld [vmem:[%s297 + $0xb0] sm:$0xff]
      %v321 = vld [vmem:[%s297 + $0xb8] sm:$0xff]
      %v322 = vld [vmem:[%s297 + $0xc0] sm:$0xff]
      %v323 = vld [vmem:[%s297 + $0xc8] sm:$0xff]
      %v324 = vld [vmem:[%s297 + $0xd0] sm:$0xff]
      %v325 = vld [vmem:[%s297 + $0xd8] sm:$0xff]
      %v326 = vld [vmem:[%s297 + $0xe0] sm:$0xff]
      %v327 = vld [vmem:[%s297 + $0xe8] sm:$0xff]
      %v328 = vld [vmem:[%s297 + $0xf0] sm:$0xff]
      %v329 = vld [vmem:[%s297 + $0xf8] sm:$0xff]
      %v362 = vunpack.c.l.b16 %v298
      %v363 = vunpack.c.h.b16 %v298
      %v364 = vunpack.c.l.b16 %v299
      %v365 = vunpack.c.h.b16 %v299
      %v366 = vunpack.c.l.b16 %v300
      %v367 = vunpack.c.h.b16 %v300
      %v368 = vunpack.c.l.b16 %v301
      %v369 = vunpack.c.h.b16 %v301
      %v370 = vunpack.c.l.b16 %v302
      %v371 = vunpack.c.h.b16 %v302
      %v372 = vunpack.c.l.b16 %v303
      %v373 = vunpack.c.h.b16 %v303
      %v374 = vunpack.c.l.b16 %v304
      %v375 = vunpack.c.h.b16 %v304
      %v376 = vunpack.c.l.b16 %v305
      %v377 = vunpack.c.h.b16 %v305
      %v378 = vunpack.c.l.b16 %v306
      %v379 = vunpack.c.h.b16 %v306
      %v380 = vunpack.c.l.b16 %v307
      %v381 = vunpack.c.h.b16 %v307
      %v382 = vunpack.c.l.b16 %v308
      %v383 = vunpack.c.h.b16 %v308
      %v384 = vunpack.c.l.b16 %v309
      %v385 = vunpack.c.h.b16 %v309
      %v386 = vunpack.c.l.b16 %v310
      %v387 = vunpack.c.h.b16 %v310
      %v388 = vunpack.c.l.b16 %v311
      %v389 = vunpack.c.h.b16 %v311
      %v390 = vunpack.c.l.b16 %v312
      %v391 = vunpack.c.h.b16 %v312
      %v392 = vunpack.c.l.b16 %v313
      %v393 = vunpack.c.h.b16 %v313
      %v394 = vunpack.c.l.b16 %v314
      %v395 = vunpack.c.h.b16 %v314
      %v396 = vunpack.c.l.b16 %v315
      %v397 = vunpack.c.h.b16 %v315
      %v398 = vunpack.c.l.b16 %v316
      %v399 = vunpack.c.h.b16 %v316
      %v400 = vunpack.c.l.b16 %v317
      %v401 = vunpack.c.h.b16 %v317
      %v402 = vunpack.c.l.b16 %v318
      %v403 = vunpack.c.h.b16 %v318
      %v404 = vunpack.c.l.b16 %v319
      %v405 = vunpack.c.h.b16 %v319
      %v406 = vunpack.c.l.b16 %v320
      %v407 = vunpack.c.h.b16 %v320
      %v408 = vunpack.c.l.b16 %v321
      %v409 = vunpack.c.h.b16 %v321
      %v410 = vunpack.c.l.b16 %v322
      %v411 = vunpack.c.h.b16 %v322
      %v412 = vunpack.c.l.b16 %v323
      %v413 = vunpack.c.h.b16 %v323
      %v414 = vunpack.c.l.b16 %v324
      %v415 = vunpack.c.h.b16 %v324
      %v416 = vunpack.c.l.b16 %v325
      %v417 = vunpack.c.h.b16 %v325
      %v418 = vunpack.c.l.b16 %v326
      %v419 = vunpack.c.h.b16 %v326
      %v420 = vunpack.c.l.b16 %v327
      %v421 = vunpack.c.h.b16 %v327
      %v422 = vunpack.c.l.b16 %v328
      %v423 = vunpack.c.h.b16 %v328
      %v424 = vunpack.c.l.b16 %v329
      %v425 = vunpack.c.h.b16 %v329
      %v426 = vpack.c.b16 %v364, %v362
      %v427 = vpack.c.b16 %v365, %v363
      %v428 = vpack.c.b16 %v368, %v366
      %v429 = vpack.c.b16 %v369, %v367
      %v430 = vpack.c.b16 %v372, %v370
      %v431 = vpack.c.b16 %v373, %v371
      %v432 = vpack.c.b16 %v376, %v374
      %v433 = vpack.c.b16 %v377, %v375
      %v434 = vpack.c.b16 %v380, %v378
      %v435 = vpack.c.b16 %v381, %v379
      %v436 = vpack.c.b16 %v384, %v382
      %v437 = vpack.c.b16 %v385, %v383
      %v438 = vpack.c.b16 %v388, %v386
      %v439 = vpack.c.b16 %v389, %v387
      %v440 = vpack.c.b16 %v392, %v390
      %v441 = vpack.c.b16 %v393, %v391
      %v442 = vpack.c.b16 %v396, %v394
      %v443 = vpack.c.b16 %v397, %v395
      %v444 = vpack.c.b16 %v400, %v398
      %v445 = vpack.c.b16 %v401, %v399
      %v446 = vpack.c.b16 %v404, %v402
      %v447 = vpack.c.b16 %v405, %v403
      %v448 = vpack.c.b16 %v408, %v406
      %v449 = vpack.c.b16 %v409, %v407
      %v450 = vpack.c.b16 %v412, %v410
      %v451 = vpack.c.b16 %v413, %v411
      %v452 = vpack.c.b16 %v416, %v414
      %v453 = vpack.c.b16 %v417, %v415
      %v454 = vpack.c.b16 %v420, %v418
      %v455 = vpack.c.b16 %v421, %v419
      %v456 = vpack.c.b16 %v424, %v422
      %v457 = vpack.c.b16 %v425, %v423
      %490 = vmatprep.subr.bf16.mxu0 %v427
      %491 = vmatpush1.bf16.msra.mxu0 %v426
      %492 = vmatprep.subr.bf16.mxu0 %v429
      %493 = vmatpush1.bf16.msra.mxu0 %v428
      %494 = vmatprep.subr.bf16.mxu0 %v431
      %495 = vmatpush1.bf16.msra.mxu0 %v430
      %496 = vmatprep.subr.bf16.mxu0 %v433
      %497 = vmatpush1.bf16.msra.mxu0 %v432
      %498 = vmatprep.subr.bf16.mxu0 %v435
      %499 = vmatpush1.bf16.msra.mxu0 %v434
      %500 = vmatprep.subr.bf16.mxu0 %v437
      %501 = vmatpush1.bf16.msra.mxu0 %v436
      %502 = vmatprep.subr.bf16.mxu0 %v439
      %503 = vmatpush1.bf16.msra.mxu0 %v438
      %504 = vmatprep.subr.bf16.mxu0 %v441
      %505 = vmatpush1.bf16.msra.mxu0 %v440
      %506 = vmatprep.subr.bf16.mxu0 %v443
      %507 = vmatpush1.bf16.msra.mxu0 %v442
      %508 = vmatprep.subr.bf16.mxu0 %v445
      %509 = vmatpush1.bf16.msra.mxu0 %v444
      %510 = vmatprep.subr.bf16.mxu0 %v447
      %511 = vmatpush1.bf16.msra.mxu0 %v446
      %512 = vmatprep.subr.bf16.mxu0 %v449
      %513 = vmatpush1.bf16.msra.mxu0 %v448
      %514 = vmatprep.subr.bf16.mxu0 %v451
      %515 = vmatpush1.bf16.msra.mxu0 %v450
      %516 = vmatprep.subr.bf16.mxu0 %v453
      %517 = vmatpush1.bf16.msra.mxu0 %v452
      %518 = vmatprep.subr.bf16.mxu0 %v455
      %519 = vmatpush1.bf16.msra.mxu0 %v454
      %520 = vmatprep.subr.bf16.mxu0 %v457
      %521 = vmatpush1.bf16.msra.mxu0 %v456
      %522 = vmatprep.mubr.bf16.mxu0 %v260
      %523 = vmatmul.mubr.bf16.gmra.mrb[0].mxu0 %v259
      %v524 = vpop.f32.mrb[0].mxu0
      %v525 = vadd.f32 0.0, %v524
      %v526 = vpop.f32.mrb[0].mxu0
      %v527 = vadd.f32 0.0, %v526
      %v528 = vpop.f32.mrb[0].mxu0
      %v529 = vadd.f32 0.0, %v528
      %v530 = vpop.f32.mrb[0].mxu0
      %v531 = vadd.f32 0.0, %v530
      %532 = vdwg.mxu0
      %v565 = vunpack.c.l.b16 %v265
      %v566 = vunpack.c.h.b16 %v265
      %v567 = vunpack.c.l.b16 %v266
      %v568 = vunpack.c.h.b16 %v266
      %v569 = vunpack.c.l.b16 %v267
      %v570 = vunpack.c.h.b16 %v267
      %v571 = vunpack.c.l.b16 %v268
      %v572 = vunpack.c.h.b16 %v268
      %v573 = vunpack.c.l.b16 %v269
      %v574 = vunpack.c.h.b16 %v269
      %v575 = vunpack.c.l.b16 %v270
      %v576 = vunpack.c.h.b16 %v270
      %v577 = vunpack.c.l.b16 %v271
      %v578 = vunpack.c.h.b16 %v271
      %v579 = vunpack.c.l.b16 %v272
      %v580 = vunpack.c.h.b16 %v272
      %v581 = vunpack.c.l.b16 %v273
      %v582 = vunpack.c.h.b16 %v273
      %v583 = vunpack.c.l.b16 %v274
      %v584 = vunpack.c.h.b16 %v274
      %v585 = vunpack.c.l.b16 %v275
      %v586 = vunpack.c.h.b16 %v275
      %v587 = vunpack.c.l.b16 %v276
      %v588 = vunpack.c.h.b16 %v276
      %v589 = vunpack.c.l.b16 %v277
      %v590 = vunpack.c.h.b16 %v277
      %v591 = vunpack.c.l.b16 %v278
      %v592 = vunpack.c.h.b16 %v278
      %v593 = vunpack.c.l.b16 %v279
      %v594 = vunpack.c.h.b16 %v279
      %v595 = vunpack.c.l.b16 %v280
      %v596 = vunpack.c.h.b16 %v280
      %v597 = vunpack.c.l.b16 %v281
      %v598 = vunpack.c.h.b16 %v281
      %v599 = vunpack.c.l.b16 %v282
      %v600 = vunpack.c.h.b16 %v282
      %v601 = vunpack.c.l.b16 %v283
      %v602 = vunpack.c.h.b16 %v283
      %v603 = vunpack.c.l.b16 %v284
      %v604 = vunpack.c.h.b16 %v284
      %v605 = vunpack.c.l.b16 %v285
      %v606 = vunpack.c.h.b16 %v285
      %v607 = vunpack.c.l.b16 %v286
      %v608 = vunpack.c.h.b16 %v286
      %v609 = vunpack.c.l.b16 %v287
      %v610 = vunpack.c.h.b16 %v287
      %v611 = vunpack.c.l.b16 %v288
      %v612 = vunpack.c.h.b16 %v288
      %v613 = vunpack.c.l.b16 %v289
      %v614 = vunpack.c.h.b16 %v289
      %v615 = vunpack.c.l.b16 %v290
      %v616 = vunpack.c.h.b16 %v290
      %v617 = vunpack.c.l.b16 %v291
      %v618 = vunpack.c.h.b16 %v291
      %v619 = vunpack.c.l.b16 %v292
      %v620 = vunpack.c.h.b16 %v292
      %v621 = vunpack.c.l.b16 %v293
      %v622 = vunpack.c.h.b16 %v293
      %v623 = vunpack.c.l.b16 %v294
      %v624 = vunpack.c.h.b16 %v294
      %v625 = vunpack.c.l.b16 %v295
      %v626 = vunpack.c.h.b16 %v295
      %v627 = vunpack.c.l.b16 %v296
      %v628 = vunpack.c.h.b16 %v296
      %v629 = vpack.c.b16 %v567, %v565
      %v630 = vpack.c.b16 %v568, %v566
      %v631 = vpack.c.b16 %v571, %v569
      %v632 = vpack.c.b16 %v572, %v570
      %v633 = vpack.c.b16 %v575, %v573
      %v634 = vpack.c.b16 %v576, %v574
      %v635 = vpack.c.b16 %v579, %v577
      %v636 = vpack.c.b16 %v580, %v578
      %v637 = vpack.c.b16 %v583, %v581
      %v638 = vpack.c.b16 %v584, %v582
      %v639 = vpack.c.b16 %v587, %v585
      %v640 = vpack.c.b16 %v588, %v586
      %v641 = vpack.c.b16 %v591, %v589
      %v642 = vpack.c.b16 %v592, %v590
      %v643 = vpack.c.b16 %v595, %v593
      %v644 = vpack.c.b16 %v596, %v594
      %v645 = vpack.c.b16 %v599, %v597
      %v646 = vpack.c.b16 %v600, %v598
      %v647 = vpack.c.b16 %v603, %v601
      %v648 = vpack.c.b16 %v604, %v602
      %v649 = vpack.c.b16 %v607, %v605
      %v650 = vpack.c.b16 %v608, %v606
      %v651 = vpack.c.b16 %v611, %v609
      %v652 = vpack.c.b16 %v612, %v610
      %v653 = vpack.c.b16 %v615, %v613
      %v654 = vpack.c.b16 %v616, %v614
      %v655 = vpack.c.b16 %v619, %v617
      %v656 = vpack.c.b16 %v620, %v618
      %v657 = vpack.c.b16 %v623, %v621
      %v658 = vpack.c.b16 %v624, %v622
      %v659 = vpack.c.b16 %v627, %v625
      %v660 = vpack.c.b16 %v628, %v626
      %693 = vmatprep.subr.bf16.mxu0 %v630
      %694 = vmatpush1.bf16.msra.mxu0 %v629
      %695 = vmatprep.subr.bf16.mxu0 %v632
      %696 = vmatpush1.bf16.msra.mxu0 %v631
      %697 = vmatprep.subr.bf16.mxu0 %v634
      %698 = vmatpush1.bf16.msra.mxu0 %v633
      %699 = vmatprep.subr.bf16.mxu0 %v636
      %700 = vmatpush1.bf16.msra.mxu0 %v635
      %701 = vmatprep.subr.bf16.mxu0 %v638
      %702 = vmatpush1.bf16.msra.mxu0 %v637
      %703 = vmatprep.subr.bf16.mxu0 %v640
      %704 = vmatpush1.bf16.msra.mxu0 %v639
      %705 = vmatprep.subr.bf16.mxu0 %v642
      %706 = vmatpush1.bf16.msra.mxu0 %v641
      %707 = vmatprep.subr.bf16.mxu0 %v644
      %708 = vmatpush1.bf16.msra.mxu0 %v643
      %709 = vmatprep.subr.bf16.mxu0 %v646
      %710 = vmatpush1.bf16.msra.mxu0 %v645
      %711 = vmatprep.subr.bf16.mxu0 %v648
      %712 = vmatpush1.bf16.msra.mxu0 %v647
      %713 = vmatprep.subr.bf16.mxu0 %v650
      %714 = vmatpush1.bf16.msra.mxu0 %v649
      %715 = vmatprep.subr.bf16.mxu0 %v652
      %716 = vmatpush1.bf16.msra.mxu0 %v651
      %717 = vmatprep.subr.bf16.mxu0 %v654
      %718 = vmatpush1.bf16.msra.mxu0 %v653
      %719 = vmatprep.subr.bf16.mxu0 %v656
      %720 = vmatpush1.bf16.msra.mxu0 %v655
      %721 = vmatprep.subr.bf16.mxu0 %v658
      %722 = vmatpush1.bf16.msra.mxu0 %v657
      %723 = vmatprep.subr.bf16.mxu0 %v660
      %724 = vmatpush1.bf16.msra.mxu0 %v659
      %725 = vmatprep.mubr.bf16.mxu0 %v262
      %726 = vmatmul.mubr.bf16.gmra.mrb[0].mxu0 %v261
      %v727 = vpop.f32.mrb[0].mxu0
      %v728 = vadd.f32 %v525, %v727
      %v729 = vpop.f32.mrb[0].mxu0
      %v730 = vadd.f32 %v527, %v729
      %v731 = vpop.f32.mrb[0].mxu0
      %v732 = vadd.f32 %v529, %v731
      %v733 = vpop.f32.mrb[0].mxu0
      %v734 = vadd.f32 %v531, %v733
      %735 = vdwg.mxu0
      %s736 = scalar_lea.vmem %s1, 512
      %v737 = vld [vmem:[%s736] sm:$0xff]
      %v738 = vld [vmem:[%s736 + $0x8] sm:$0xff]
      %v739 = vld [vmem:[%s736 + $0x10] sm:$0xff]
      %v740 = vld [vmem:[%s736 + $0x18] sm:$0xff]
      %v741 = vld [vmem:[%s736 + $0x20] sm:$0xff]
      %v742 = vld [vmem:[%s736 + $0x28] sm:$0xff]
      %v743 = vld [vmem:[%s736 + $0x30] sm:$0xff]
      %v744 = vld [vmem:[%s736 + $0x38] sm:$0xff]
      %v745 = vld [vmem:[%s736 + $0x40] sm:$0xff]
      %v746 = vld [vmem:[%s736 + $0x48] sm:$0xff]
      %v747 = vld [vmem:[%s736 + $0x50] sm:$0xff]
      %v748 = vld [vmem:[%s736 + $0x58] sm:$0xff]
      %v749 = vld [vmem:[%s736 + $0x60] sm:$0xff]
      %v750 = vld [vmem:[%s736 + $0x68] sm:$0xff]
      %v751 = vld [vmem:[%s736 + $0x70] sm:$0xff]
      %v752 = vld [vmem:[%s736 + $0x78] sm:$0xff]
      %v753 = vld [vmem:[%s736 + $0x80] sm:$0xff]
      %v754 = vld [vmem:[%s736 + $0x88] sm:$0xff]
      %v755 = vld [vmem:[%s736 + $0x90] sm:$0xff]
      %v756 = vld [vmem:[%s736 + $0x98] sm:$0xff]
      %v757 = vld [vmem:[%s736 + $0xa0] sm:$0xff]
      %v758 = vld [vmem:[%s736 + $0xa8] sm:$0xff]
      %v759 = vld [vmem:[%s736 + $0xb0] sm:$0xff]
      %v760 = vld [vmem:[%s736 + $0xb8] sm:$0xff]
      %v761 = vld [vmem:[%s736 + $0xc0] sm:$0xff]
      %v762 = vld [vmem:[%s736 + $0xc8] sm:$0xff]
      %v763 = vld [vmem:[%s736 + $0xd0] sm:$0xff]
      %v764 = vld [vmem:[%s736 + $0xd8] sm:$0xff]
      %v765 = vld [vmem:[%s736 + $0xe0] sm:$0xff]
      %v766 = vld [vmem:[%s736 + $0xe8] sm:$0xff]
      %v767 = vld [vmem:[%s736 + $0xf0] sm:$0xff]
      %v768 = vld [vmem:[%s736 + $0xf8] sm:$0xff]
      %v801 = vunpack.c.l.b16 %v737
      %v802 = vunpack.c.h.b16 %v737
      %v803 = vunpack.c.l.b16 %v738
      %v804 = vunpack.c.h.b16 %v738
      %v805 = vunpack.c.l.b16 %v739
      %v806 = vunpack.c.h.b16 %v739
      %v807 = vunpack.c.l.b16 %v740
      %v808 = vunpack.c.h.b16 %v740
      %v809 = vunpack.c.l.b16 %v741
      %v810 = vunpack.c.h.b16 %v741
      %v811 = vunpack.c.l.b16 %v742
      %v812 = vunpack.c.h.b16 %v742
      %v813 = vunpack.c.l.b16 %v743
      %v814 = vunpack.c.h.b16 %v743
      %v815 = vunpack.c.l.b16 %v744
      %v816 = vunpack.c.h.b16 %v744
      %v817 = vunpack.c.l.b16 %v745
      %v818 = vunpack.c.h.b16 %v745
      %v819 = vunpack.c.l.b16 %v746
      %v820 = vunpack.c.h.b16 %v746
      %v821 = vunpack.c.l.b16 %v747
      %v822 = vunpack.c.h.b16 %v747
      %v823 = vunpack.c.l.b16 %v748
      %v824 = vunpack.c.h.b16 %v748
      %v825 = vunpack.c.l.b16 %v749
      %v826 = vunpack.c.h.b16 %v749
      %v827 = vunpack.c.l.b16 %v750
      %v828 = vunpack.c.h.b16 %v750
      %v829 = vunpack.c.l.b16 %v751
      %v830 = vunpack.c.h.b16 %v751
      %v831 = vunpack.c.l.b16 %v752
      %v832 = vunpack.c.h.b16 %v752
      %v833 = vunpack.c.l.b16 %v753
      %v834 = vunpack.c.h.b16 %v753
      %v835 = vunpack.c.l.b16 %v754
      %v836 = vunpack.c.h.b16 %v754
      %v837 = vunpack.c.l.b16 %v755
      %v838 = vunpack.c.h.b16 %v755
      %v839 = vunpack.c.l.b16 %v756
      %v840 = vunpack.c.h.b16 %v756
      %v841 = vunpack.c.l.b16 %v757
      %v842 = vunpack.c.h.b16 %v757
      %v843 = vunpack.c.l.b16 %v758
      %v844 = vunpack.c.h.b16 %v758
      %v845 = vunpack.c.l.b16 %v759
      %v846 = vunpack.c.h.b16 %v759
      %v847 = vunpack.c.l.b16 %v760
      %v848 = vunpack.c.h.b16 %v760
      %v849 = vunpack.c.l.b16 %v761
      %v850 = vunpack.c.h.b16 %v761
      %v851 = vunpack.c.l.b16 %v762
      %v852 = vunpack.c.h.b16 %v762
      %v853 = vunpack.c.l.b16 %v763
      %v854 = vunpack.c.h.b16 %v763
      %v855 = vunpack.c.l.b16 %v764
      %v856 = vunpack.c.h.b16 %v764
      %v857 = vunpack.c.l.b16 %v765
      %v858 = vunpack.c.h.b16 %v765
      %v859 = vunpack.c.l.b16 %v766
      %v860 = vunpack.c.h.b16 %v766
      %v861 = vunpack.c.l.b16 %v767
      %v862 = vunpack.c.h.b16 %v767
      %v863 = vunpack.c.l.b16 %v768
      %v864 = vunpack.c.h.b16 %v768
      %v865 = vpack.c.b16 %v803, %v801
      %v866 = vpack.c.b16 %v804, %v802
      %v867 = vpack.c.b16 %v807, %v805
      %v868 = vpack.c.b16 %v808, %v806
      %v869 = vpack.c.b16 %v811, %v809
      %v870 = vpack.c.b16 %v812, %v810
      %v871 = vpack.c.b16 %v815, %v813
      %v872 = vpack.c.b16 %v816, %v814
      %v873 = vpack.c.b16 %v819, %v817
      %v874 = vpack.c.b16 %v820, %v818
      %v875 = vpack.c.b16 %v823, %v821
      %v876 = vpack.c.b16 %v824, %v822
      %v877 = vpack.c.b16 %v827, %v825
      %v878 = vpack.c.b16 %v828, %v826
      %v879 = vpack.c.b16 %v831, %v829
      %v880 = vpack.c.b16 %v832, %v830
      %v881 = vpack.c.b16 %v835, %v833
      %v882 = vpack.c.b16 %v836, %v834
      %v883 = vpack.c.b16 %v839, %v837
      %v884 = vpack.c.b16 %v840, %v838
      %v885 = vpack.c.b16 %v843, %v841
      %v886 = vpack.c.b16 %v844, %v842
      %v887 = vpack.c.b16 %v847, %v845
      %v888 = vpack.c.b16 %v848, %v846
      %v889 = vpack.c.b16 %v851, %v849
      %v890 = vpack.c.b16 %v852, %v850
      %v891 = vpack.c.b16 %v855, %v853
      %v892 = vpack.c.b16 %v856, %v854
      %v893 = vpack.c.b16 %v859, %v857
      %v894 = vpack.c.b16 %v860, %v858
      %v895 = vpack.c.b16 %v863, %v861
      %v896 = vpack.c.b16 %v864, %v862
      %929 = vmatprep.subr.bf16.mxu0 %v866
      %930 = vmatpush1.bf16.msra.mxu0 %v865
      %931 = vmatprep.subr.bf16.mxu0 %v868
      %932 = vmatpush1.bf16.msra.mxu0 %v867
      %933 = vmatprep.subr.bf16.mxu0 %v870
      %934 = vmatpush1.bf16.msra.mxu0 %v869
      %935 = vmatprep.subr.bf16.mxu0 %v872
      %936 = vmatpush1.bf16.msra.mxu0 %v871
      %937 = vmatprep.subr.bf16.mxu0 %v874
      %938 = vmatpush1.bf16.msra.mxu0 %v873
      %939 = vmatprep.subr.bf16.mxu0 %v876
      %940 = vmatpush1.bf16.msra.mxu0 %v875
      %941 = vmatprep.subr.bf16.mxu0 %v878
      %942 = vmatpush1.bf16.msra.mxu0 %v877
      %943 = vmatprep.subr.bf16.mxu0 %v880
      %944 = vmatpush1.bf16.msra.mxu0 %v879
      %945 = vmatprep.subr.bf16.mxu0 %v882
      %946 = vmatpush1.bf16.msra.mxu0 %v881
      %947 = vmatprep.subr.bf16.mxu0 %v884
      %948 = vmatpush1.bf16.msra.mxu0 %v883
      %949 = vmatprep.subr.bf16.mxu0 %v886
      %950 = vmatpush1.bf16.msra.mxu0 %v885
      %951 = vmatprep.subr.bf16.mxu0 %v888
      %952 = vmatpush1.bf16.msra.mxu0 %v887
      %953 = vmatprep.subr.bf16.mxu0 %v890
      %954 = vmatpush1.bf16.msra.mxu0 %v889
      %955 = vmatprep.subr.bf16.mxu0 %v892
      %956 = vmatpush1.bf16.msra.mxu0 %v891
      %957 = vmatprep.subr.bf16.mxu0 %v894
      %958 = vmatpush1.bf16.msra.mxu0 %v893
      %959 = vmatprep.subr.bf16.mxu0 %v896
      %960 = vmatpush1.bf16.msra.mxu0 %v895
      %961 = vmatprep.mubr.bf16.mxu0 %v264
      %962 = vmatmul.mubr.bf16.gmra.mrb[0].mxu0 %v263
      %v963 = vpop.f32.mrb[0].mxu0
      %v964 = vadd.f32 0.0, %v963
      %v965 = vpop.f32.mrb[0].mxu0
      %v966 = vadd.f32 0.0, %v965
      %v967 = vpop.f32.mrb[0].mxu0
      %v968 = vadd.f32 0.0, %v967
      %v969 = vpop.f32.mrb[0].mxu0
      %v970 = vadd.f32 0.0, %v969
      %971 = vdwg.mxu0
      %v972 = vadd.f32 %v728, %v964
      %v973 = vadd.f32 %v730, %v966
      %v974 = vadd.f32 %v732, %v968
      %v975 = vadd.f32 %v734, %v970
      %v976 = vld [vmem:[%s2] sm:$0x3]
      %v978 = vlaneseq
      %v979 = vshrl.u32 %v978, 7
      %v980 = vsub.s32 0, %v979
      %v981 = vrot.slane %v976, %v980
      %v982 = vlaneseq
      %v983 = vshrl.u32 %v982, 7
      %v984 = vsub.s32 1, %v983
      %v985 = vrot.slane %v976, %v984
      %v988 = vadd.f32 %v972, %v981
      %v989 = vadd.f32 %v973, %v985
      %v990 = vadd.f32 %v974, %v981
      %v991 = vadd.f32 %v975, %v985
      %v992 = vmax.f32 %v988, 0.0
      %v993 = vmax.f32 %v989, 0.0
      %v994 = vmax.f32 %v990, 0.0
      %v995 = vmax.f32 %v991, 0.0
      %v996 = vpack.c.bf16 %v994, %v992
      %v997 = vpack.c.bf16 %v995, %v993
      %v998 = vld [vmem:[%s3] sm:$0xff]
      %v999 = vld [vmem:[%s3 + $0x8] sm:$0xff]
      %v1000 = vld [vmem:[%s3 + $0x10] sm:$0xff]
      %v1001 = vld [vmem:[%s3 + $0x18] sm:$0xff]
      %v1002 = vld [vmem:[%s3 + $0x20] sm:$0xff]
      %v1003 = vld [vmem:[%s3 + $0x28] sm:$0xff]
      %v1004 = vld [vmem:[%s3 + $0x30] sm:$0xff]
      %v1005 = vld [vmem:[%s3 + $0x38] sm:$0xff]
      %v1006 = vld [vmem:[%s3 + $0x40] sm:$0xff]
      %v1007 = vld [vmem:[%s3 + $0x48] sm:$0xff]
      %v1008 = vld [vmem:[%s3 + $0x50] sm:$0xff]
      %v1009 = vld [vmem:[%s3 + $0x58] sm:$0xff]
      %v1010 = vld [vmem:[%s3 + $0x60] sm:$0xff]
      %v1011 = vld [vmem:[%s3 + $0x68] sm:$0xff]
      %v1012 = vld [vmem:[%s3 + $0x70] sm:$0xff]
      %v1013 = vld [vmem:[%s3 + $0x78] sm:$0xff]
      %v1014 = vld [vmem:[%s3 + $0x80] sm:$0xff]
      %v1015 = vld [vmem:[%s3 + $0x88] sm:$0xff]
      %v1016 = vld [vmem:[%s3 + $0x90] sm:$0xff]
      %v1017 = vld [vmem:[%s3 + $0x98] sm:$0xff]
      %v1018 = vld [vmem:[%s3 + $0xa0] sm:$0xff]
      %v1019 = vld [vmem:[%s3 + $0xa8] sm:$0xff]
      %v1020 = vld [vmem:[%s3 + $0xb0] sm:$0xff]
      %v1021 = vld [vmem:[%s3 + $0xb8] sm:$0xff]
      %v1022 = vld [vmem:[%s3 + $0xc0] sm:$0xff]
      %v1023 = vld [vmem:[%s3 + $0xc8] sm:$0xff]
      %v1024 = vld [vmem:[%s3 + $0xd0] sm:$0xff]
      %v1025 = vld [vmem:[%s3 + $0xd8] sm:$0xff]
      %v1026 = vld [vmem:[%s3 + $0xe0] sm:$0xff]
      %v1027 = vld [vmem:[%s3 + $0xe8] sm:$0xff]
      %v1028 = vld [vmem:[%s3 + $0xf0] sm:$0xff]
      %v1029 = vld [vmem:[%s3 + $0xf8] sm:$0xff]
      %v1030 = vld [vmem:[%s4] sm:$0x3]
      %v1032 = vlaneseq
      %v1033 = vshrl.u32 %v1032, 7
      %v1034 = vsub.s32 0, %v1033
      %v1035 = vrot.slane %v1030, %v1034
      %v1036 = vlaneseq
      %v1037 = vshrl.u32 %v1036, 7
      %v1038 = vsub.s32 1, %v1037
      %v1039 = vrot.slane %v1030, %v1038
      %v1074 = vunpack.c.l.b16 %v998
      %v1075 = vunpack.c.h.b16 %v998
      %v1076 = vunpack.c.l.b16 %v999
      %v1077 = vunpack.c.h.b16 %v999
      %v1078 = vunpack.c.l.b16 %v1000
      %v1079 = vunpack.c.h.b16 %v1000
      %v1080 = vunpack.c.l.b16 %v1001
      %v1081 = vunpack.c.h.b16 %v1001
      %v1082 = vunpack.c.l.b16 %v1002
      %v1083 = vunpack.c.h.b16 %v1002
      %v1084 = vunpack.c.l.b16 %v1003
      %v1085 = vunpack.c.h.b16 %v1003
      %v1086 = vunpack.c.l.b16 %v1004
      %v1087 = vunpack.c.h.b16 %v1004
      %v1088 = vunpack.c.l.b16 %v1005
      %v1089 = vunpack.c.h.b16 %v1005
      %v1090 = vunpack.c.l.b16 %v1006
      %v1091 = vunpack.c.h.b16 %v1006
      %v1092 = vunpack.c.l.b16 %v1007
      %v1093 = vunpack.c.h.b16 %v1007
      %v1094 = vunpack.c.l.b16 %v1008
      %v1095 = vunpack.c.h.b16 %v1008
      %v1096 = vunpack.c.l.b16 %v1009
      %v1097 = vunpack.c.h.b16 %v1009
      %v1098 = vunpack.c.l.b16 %v1010
      %v1099 = vunpack.c.h.b16 %v1010
      %v1100 = vunpack.c.l.b16 %v1011
      %v1101 = vunpack.c.h.b16 %v1011
      %v1102 = vunpack.c.l.b16 %v1012
      %v1103 = vunpack.c.h.b16 %v1012
      %v1104 = vunpack.c.l.b16 %v1013
      %v1105 = vunpack.c.h.b16 %v1013
      %v1106 = vunpack.c.l.b16 %v1014
      %v1107 = vunpack.c.h.b16 %v1014
      %v1108 = vunpack.c.l.b16 %v1015
      %v1109 = vunpack.c.h.b16 %v1015
      %v1110 = vunpack.c.l.b16 %v1016
      %v1111 = vunpack.c.h.b16 %v1016
      %v1112 = vunpack.c.l.b16 %v1017
      %v1113 = vunpack.c.h.b16 %v1017
      %v1114 = vunpack.c.l.b16 %v1018
      %v1115 = vunpack.c.h.b16 %v1018
      %v1116 = vunpack.c.l.b16 %v1019
      %v1117 = vunpack.c.h.b16 %v1019
      %v1118 = vunpack.c.l.b16 %v1020
      %v1119 = vunpack.c.h.b16 %v1020
      %v1120 = vunpack.c.l.b16 %v1021
      %v1121 = vunpack.c.h.b16 %v1021
      %v1122 = vunpack.c.l.b16 %v1022
      %v1123 = vunpack.c.h.b16 %v1022
      %v1124 = vunpack.c.l.b16 %v1023
      %v1125 = vunpack.c.h.b16 %v1023
      %v1126 = vunpack.c.l.b16 %v1024
      %v1127 = vunpack.c.h.b16 %v1024
      %v1128 = vunpack.c.l.b16 %v1025
      %v1129 = vunpack.c.h.b16 %v1025
      %v1130 = vunpack.c.l.b16 %v1026
      %v1131 = vunpack.c.h.b16 %v1026
      %v1132 = vunpack.c.l.b16 %v1027
      %v1133 = vunpack.c.h.b16 %v1027
      %v1134 = vunpack.c.l.b16 %v1028
      %v1135 = vunpack.c.h.b16 %v1028
      %v1136 = vunpack.c.l.b16 %v1029
      %v1137 = vunpack.c.h.b16 %v1029
      %v1138 = vpack.c.b16 %v1076, %v1074
      %v1139 = vpack.c.b16 %v1077, %v1075
      %v1140 = vpack.c.b16 %v1080, %v1078
      %v1141 = vpack.c.b16 %v1081, %v1079
      %v1142 = vpack.c.b16 %v1084, %v1082
      %v1143 = vpack.c.b16 %v1085, %v1083
      %v1144 = vpack.c.b16 %v1088, %v1086
      %v1145 = vpack.c.b16 %v1089, %v1087
      %v1146 = vpack.c.b16 %v1092, %v1090
      %v1147 = vpack.c.b16 %v1093, %v1091
      %v1148 = vpack.c.b16 %v1096, %v1094
      %v1149 = vpack.c.b16 %v1097, %v1095
      %v1150 = vpack.c.b16 %v1100, %v1098
      %v1151 = vpack.c.b16 %v1101, %v1099
      %v1152 = vpack.c.b16 %v1104, %v1102
      %v1153 = vpack.c.b16 %v1105, %v1103
      %v1154 = vpack.c.b16 %v1108, %v1106
      %v1155 = vpack.c.b16 %v1109, %v1107
      %v1156 = vpack.c.b16 %v1112, %v1110
      %v1157 = vpack.c.b16 %v1113, %v1111
      %v1158 = vpack.c.b16 %v1116, %v1114
      %v1159 = vpack.c.b16 %v1117, %v1115
      %v1160 = vpack.c.b16 %v1120, %v1118
      %v1161 = vpack.c.b16 %v1121, %v1119
      %v1162 = vpack.c.b16 %v1124, %v1122
      %v1163 = vpack.c.b16 %v1125, %v1123
      %v1164 = vpack.c.b16 %v1128, %v1126
      %v1165 = vpack.c.b16 %v1129, %v1127
      %v1166 = vpack.c.b16 %v1132, %v1130
      %v1167 = vpack.c.b16 %v1133, %v1131
      %v1168 = vpack.c.b16 %v1136, %v1134
      %v1169 = vpack.c.b16 %v1137, %v1135
      %1202 = vmatprep.subr.bf16.mxu0 %v1139
      %1203 = vmatpush1.bf16.msra.mxu0 %v1138
      %1204 = vmatprep.subr.bf16.mxu0 %v1141
      %1205 = vmatpush1.bf16.msra.mxu0 %v1140
      %1206 = vmatprep.subr.bf16.mxu0 %v1143
      %1207 = vmatpush1.bf16.msra.mxu0 %v1142
      %1208 = vmatprep.subr.bf16.mxu0 %v1145
      %1209 = vmatpush1.bf16.msra.mxu0 %v1144
      %1210 = vmatprep.subr.bf16.mxu0 %v1147
      %1211 = vmatpush1.bf16.msra.mxu0 %v1146
      %1212 = vmatprep.subr.bf16.mxu0 %v1149
      %1213 = vmatpush1.bf16.msra.mxu0 %v1148
      %1214 = vmatprep.subr.bf16.mxu0 %v1151
      %1215 = vmatpush1.bf16.msra.mxu0 %v1150
      %1216 = vmatprep.subr.bf16.mxu0 %v1153
      %1217 = vmatpush1.bf16.msra.mxu0 %v1152
      %1218 = vmatprep.subr.bf16.mxu0 %v1155
      %1219 = vmatpush1.bf16.msra.mxu0 %v1154
      %1220 = vmatprep.subr.bf16.mxu0 %v1157
      %1221 = vmatpush1.bf16.msra.mxu0 %v1156
      %1222 = vmatprep.subr.bf16.mxu0 %v1159
      %1223 = vmatpush1.bf16.msra.mxu0 %v1158
      %1224 = vmatprep.subr.bf16.mxu0 %v1161
      %1225 = vmatpush1.bf16.msra.mxu0 %v1160
      %1226 = vmatprep.subr.bf16.mxu0 %v1163
      %1227 = vmatpush1.bf16.msra.mxu0 %v1162
      %1228 = vmatprep.subr.bf16.mxu0 %v1165
      %1229 = vmatpush1.bf16.msra.mxu0 %v1164
      %1230 = vmatprep.subr.bf16.mxu0 %v1167
      %1231 = vmatpush1.bf16.msra.mxu0 %v1166
      %1232 = vmatprep.subr.bf16.mxu0 %v1169
      %1233 = vmatpush1.bf16.msra.mxu0 %v1168
      %1234 = vmatprep.mubr.bf16.mxu0 %v997
      %1235 = vmatmul.mubr.bf16.gmra.mrb[0].mxu0 %v996
      %v1236 = vpop.f32.mrb[0].mxu0
      %v1237 = vadd.f32 %v1035, %v1236
      %v1238 = vpop.f32.mrb[0].mxu0
      %v1239 = vadd.f32 %v1039, %v1238
      %v1240 = vpop.f32.mrb[0].mxu0
      %v1241 = vadd.f32 %v1035, %v1240
      %v1242 = vpop.f32.mrb[0].mxu0
      %v1243 = vadd.f32 %v1039, %v1242
      %1244 = vdwg.mxu0
      %v1245 = vmax.f32 %v1237, 0.0
      %v1246 = vmax.f32 %v1239, 0.0
      %v1247 = vmax.f32 %v1241, 0.0
      %v1248 = vmax.f32 %v1243, 0.0
      %v1249 = vadd.f32 %v225, %v1245
      %v1250 = vadd.f32 %v226, %v1246
      %v1251 = vadd.f32 %v227, %v1247
      %v1252 = vadd.f32 %v228, %v1248
      %v1257 = vrot.slane %v1249, 7
      %v1258 = vrot.slane %v1250, 7
      %v1259 = vrot.slane %v1251, 7
      %v1260 = vsel %vm233, %v1257, %v1259
      %v1261 = vrot.slane %v1252, 7
      %v1262 = vsel %vm233, %v1258, %v1261
      %v1267 = vsel %vm233, 0.0, %v1257
      %v1268 = vsel %vm233, 0.0, %v1258
      %v1269 = vrot.slane %v1249, 1
      %v1270 = vrot.slane %v1251, 1
      %v1271 = vsel %vm246, %v1269, %v1270
      %v1272 = vrot.slane %v1250, 1
      %v1273 = vrot.slane %v1252, 1
      %v1274 = vsel %vm246, %v1272, %v1273
      %v1279 = vsel %vm246, %v1270, 0.0
      %v1280 = vsel %vm246, %v1273, 0.0
      %v1281 = vpack.c.bf16 %v1251, %v1249
      %v1282 = vpack.c.bf16 %v1252, %v1250
      %v1283 = vpack.c.bf16 %v1260, %v1267
      %v1284 = vpack.c.bf16 %v1262, %v1268
      %v1285 = vpack.c.bf16 %v1279, %v1271
      %v1286 = vpack.c.bf16 %v1280, %v1274
      %s1287 = scalar_lea.vmem %s1, 768
      %v1288 = vld [vmem:[%s1287] sm:$0xff]
      %v1289 = vld [vmem:[%s1287 + $0x8] sm:$0xff]
      %v1290 = vld [vmem:[%s1287 + $0x10] sm:$0xff]
      %v1291 = vld [vmem:[%s1287 + $0x18] sm:$0xff]
      %v1292 = vld [vmem:[%s1287 + $0x20] sm:$0xff]
      %v1293 = vld [vmem:[%s1287 + $0x28] sm:$0xff]
      %v1294 = vld [vmem:[%s1287 + $0x30] sm:$0xff]
      %v1295 = vld [vmem:[%s1287 + $0x38] sm:$0xff]
      %v1296 = vld [vmem:[%s1287 + $0x40] sm:$0xff]
      %v1297 = vld [vmem:[%s1287 + $0x48] sm:$0xff]
      %v1298 = vld [vmem:[%s1287 + $0x50] sm:$0xff]
      %v1299 = vld [vmem:[%s1287 + $0x58] sm:$0xff]
      %v1300 = vld [vmem:[%s1287 + $0x60] sm:$0xff]
      %v1301 = vld [vmem:[%s1287 + $0x68] sm:$0xff]
      %v1302 = vld [vmem:[%s1287 + $0x70] sm:$0xff]
      %v1303 = vld [vmem:[%s1287 + $0x78] sm:$0xff]
      %v1304 = vld [vmem:[%s1287 + $0x80] sm:$0xff]
      %v1305 = vld [vmem:[%s1287 + $0x88] sm:$0xff]
      %v1306 = vld [vmem:[%s1287 + $0x90] sm:$0xff]
      %v1307 = vld [vmem:[%s1287 + $0x98] sm:$0xff]
      %v1308 = vld [vmem:[%s1287 + $0xa0] sm:$0xff]
      %v1309 = vld [vmem:[%s1287 + $0xa8] sm:$0xff]
      %v1310 = vld [vmem:[%s1287 + $0xb0] sm:$0xff]
      %v1311 = vld [vmem:[%s1287 + $0xb8] sm:$0xff]
      %v1312 = vld [vmem:[%s1287 + $0xc0] sm:$0xff]
      %v1313 = vld [vmem:[%s1287 + $0xc8] sm:$0xff]
      %v1314 = vld [vmem:[%s1287 + $0xd0] sm:$0xff]
      %v1315 = vld [vmem:[%s1287 + $0xd8] sm:$0xff]
      %v1316 = vld [vmem:[%s1287 + $0xe0] sm:$0xff]
      %v1317 = vld [vmem:[%s1287 + $0xe8] sm:$0xff]
      %v1318 = vld [vmem:[%s1287 + $0xf0] sm:$0xff]
      %v1319 = vld [vmem:[%s1287 + $0xf8] sm:$0xff]
      %s1320 = scalar_lea.vmem %s1, 1024
      %v1321 = vld [vmem:[%s1320] sm:$0xff]
      %v1322 = vld [vmem:[%s1320 + $0x8] sm:$0xff]
      %v1323 = vld [vmem:[%s1320 + $0x10] sm:$0xff]
      %v1324 = vld [vmem:[%s1320 + $0x18] sm:$0xff]
      %v1325 = vld [vmem:[%s1320 + $0x20] sm:$0xff]
      %v1326 = vld [vmem:[%s1320 + $0x28] sm:$0xff]
      %v1327 = vld [vmem:[%s1320 + $0x30] sm:$0xff]
      %v1328 = vld [vmem:[%s1320 + $0x38] sm:$0xff]
      %v1329 = vld [vmem:[%s1320 + $0x40] sm:$0xff]
      %v1330 = vld [vmem:[%s1320 + $0x48] sm:$0xff]
      %v1331 = vld [vmem:[%s1320 + $0x50] sm:$0xff]
      %v1332 = vld [vmem:[%s1320 + $0x58] sm:$0xff]
      %v1333 = vld [vmem:[%s1320 + $0x60] sm:$0xff]
      %v1334 = vld [vmem:[%s1320 + $0x68] sm:$0xff]
      %v1335 = vld [vmem:[%s1320 + $0x70] sm:$0xff]
      %v1336 = vld [vmem:[%s1320 + $0x78] sm:$0xff]
      %v1337 = vld [vmem:[%s1320 + $0x80] sm:$0xff]
      %v1338 = vld [vmem:[%s1320 + $0x88] sm:$0xff]
      %v1339 = vld [vmem:[%s1320 + $0x90] sm:$0xff]
      %v1340 = vld [vmem:[%s1320 + $0x98] sm:$0xff]
      %v1341 = vld [vmem:[%s1320 + $0xa0] sm:$0xff]
      %v1342 = vld [vmem:[%s1320 + $0xa8] sm:$0xff]
      %v1343 = vld [vmem:[%s1320 + $0xb0] sm:$0xff]
      %v1344 = vld [vmem:[%s1320 + $0xb8] sm:$0xff]
      %v1345 = vld [vmem:[%s1320 + $0xc0] sm:$0xff]
      %v1346 = vld [vmem:[%s1320 + $0xc8] sm:$0xff]
      %v1347 = vld [vmem:[%s1320 + $0xd0] sm:$0xff]
      %v1348 = vld [vmem:[%s1320 + $0xd8] sm:$0xff]
      %v1349 = vld [vmem:[%s1320 + $0xe0] sm:$0xff]
      %v1350 = vld [vmem:[%s1320 + $0xe8] sm:$0xff]
      %v1351 = vld [vmem:[%s1320 + $0xf0] sm:$0xff]
      %v1352 = vld [vmem:[%s1320 + $0xf8] sm:$0xff]
      %v1385 = vunpack.c.l.b16 %v1321
      %v1386 = vunpack.c.h.b16 %v1321
      %v1387 = vunpack.c.l.b16 %v1322
      %v1388 = vunpack.c.h.b16 %v1322
      %v1389 = vunpack.c.l.b16 %v1323
      %v1390 = vunpack.c.h.b16 %v1323
      %v1391 = vunpack.c.l.b16 %v1324
      %v1392 = vunpack.c.h.b16 %v1324
      %v1393 = vunpack.c.l.b16 %v1325
      %v1394 = vunpack.c.h.b16 %v1325
      %v1395 = vunpack.c.l.b16 %v1326
      %v1396 = vunpack.c.h.b16 %v1326
      %v1397 = vunpack.c.l.b16 %v1327
      %v1398 = vunpack.c.h.b16 %v1327
      %v1399 = vunpack.c.l.b16 %v1328
      %v1400 = vunpack.c.h.b16 %v1328
      %v1401 = vunpack.c.l.b16 %v1329
      %v1402 = vunpack.c.h.b16 %v1329
      %v1403 = vunpack.c.l.b16 %v1330
      %v1404 = vunpack.c.h.b16 %v1330
      %v1405 = vunpack.c.l.b16 %v1331
      %v1406 = vunpack.c.h.b16 %v1331
      %v1407 = vunpack.c.l.b16 %v1332
      %v1408 = vunpack.c.h.b16 %v1332
      %v1409 = vunpack.c.l.b16 %v1333
      %v1410 = vunpack.c.h.b16 %v1333
      %v1411 = vunpack.c.l.b16 %v1334
      %v1412 = vunpack.c.h.b16 %v1334
      %v1413 = vunpack.c.l.b16 %v1335
      %v1414 = vunpack.c.h.b16 %v1335
      %v1415 = vunpack.c.l.b16 %v1336
      %v1416 = vunpack.c.h.b16 %v1336
      %v1417 = vunpack.c.l.b16 %v1337
      %v1418 = vunpack.c.h.b16 %v1337
      %v1419 = vunpack.c.l.b16 %v1338
      %v1420 = vunpack.c.h.b16 %v1338
      %v1421 = vunpack.c.l.b16 %v1339
      %v1422 = vunpack.c.h.b16 %v1339
      %v1423 = vunpack.c.l.b16 %v1340
      %v1424 = vunpack.c.h.b16 %v1340
      %v1425 = vunpack.c.l.b16 %v1341
      %v1426 = vunpack.c.h.b16 %v1341
      %v1427 = vunpack.c.l.b16 %v1342
      %v1428 = vunpack.c.h.b16 %v1342
      %v1429 = vunpack.c.l.b16 %v1343
      %v1430 = vunpack.c.h.b16 %v1343
      %v1431 = vunpack.c.l.b16 %v1344
      %v1432 = vunpack.c.h.b16 %v1344
      %v1433 = vunpack.c.l.b16 %v1345
      %v1434 = vunpack.c.h.b16 %v1345
      %v1435 = vunpack.c.l.b16 %v1346
      %v1436 = vunpack.c.h.b16 %v1346
      %v1437 = vunpack.c.l.b16 %v1347
      %v1438 = vunpack.c.h.b16 %v1347
      %v1439 = vunpack.c.l.b16 %v1348
      %v1440 = vunpack.c.h.b16 %v1348
      %v1441 = vunpack.c.l.b16 %v1349
      %v1442 = vunpack.c.h.b16 %v1349
      %v1443 = vunpack.c.l.b16 %v1350
      %v1444 = vunpack.c.h.b16 %v1350
      %v1445 = vunpack.c.l.b16 %v1351
      %v1446 = vunpack.c.h.b16 %v1351
      %v1447 = vunpack.c.l.b16 %v1352
      %v1448 = vunpack.c.h.b16 %v1352
      %v1449 = vpack.c.b16 %v1387, %v1385
      %v1450 = vpack.c.b16 %v1388, %v1386
      %v1451 = vpack.c.b16 %v1391, %v1389
      %v1452 = vpack.c.b16 %v1392, %v1390
      %v1453 = vpack.c.b16 %v1395, %v1393
      %v1454 = vpack.c.b16 %v1396, %v1394
      %v1455 = vpack.c.b16 %v1399, %v1397
      %v1456 = vpack.c.b16 %v1400, %v1398
      %v1457 = vpack.c.b16 %v1403, %v1401
      %v1458 = vpack.c.b16 %v1404, %v1402
      %v1459 = vpack.c.b16 %v1407, %v1405
      %v1460 = vpack.c.b16 %v1408, %v1406
      %v1461 = vpack.c.b16 %v1411, %v1409
      %v1462 = vpack.c.b16 %v1412, %v1410
      %v1463 = vpack.c.b16 %v1415, %v1413
      %v1464 = vpack.c.b16 %v1416, %v1414
      %v1465 = vpack.c.b16 %v1419, %v1417
      %v1466 = vpack.c.b16 %v1420, %v1418
      %v1467 = vpack.c.b16 %v1423, %v1421
      %v1468 = vpack.c.b16 %v1424, %v1422
      %v1469 = vpack.c.b16 %v1427, %v1425
      %v1470 = vpack.c.b16 %v1428, %v1426
      %v1471 = vpack.c.b16 %v1431, %v1429
      %v1472 = vpack.c.b16 %v1432, %v1430
      %v1473 = vpack.c.b16 %v1435, %v1433
      %v1474 = vpack.c.b16 %v1436, %v1434
      %v1475 = vpack.c.b16 %v1439, %v1437
      %v1476 = vpack.c.b16 %v1440, %v1438
      %v1477 = vpack.c.b16 %v1443, %v1441
      %v1478 = vpack.c.b16 %v1444, %v1442
      %v1479 = vpack.c.b16 %v1447, %v1445
      %v1480 = vpack.c.b16 %v1448, %v1446
      %1513 = vmatprep.subr.bf16.mxu0 %v1450
      %1514 = vmatpush1.bf16.msra.mxu0 %v1449
      %1515 = vmatprep.subr.bf16.mxu0 %v1452
      %1516 = vmatpush1.bf16.msra.mxu0 %v1451
      %1517 = vmatprep.subr.bf16.mxu0 %v1454
      %1518 = vmatpush1.bf16.msra.mxu0 %v1453
      %1519 = vmatprep.subr.bf16.mxu0 %v1456
      %1520 = vmatpush1.bf16.msra.mxu0 %v1455
      %1521 = vmatprep.subr.bf16.mxu0 %v1458
      %1522 = vmatpush1.bf16.msra.mxu0 %v1457
      %1523 = vmatprep.subr.bf16.mxu0 %v1460
      %1524 = vmatpush1.bf16.msra.mxu0 %v1459
      %1525 = vmatprep.subr.bf16.mxu0 %v1462
      %1526 = vmatpush1.bf16.msra.mxu0 %v1461
      %1527 = vmatprep.subr.bf16.mxu0 %v1464
      %1528 = vmatpush1.bf16.msra.mxu0 %v1463
      %1529 = vmatprep.subr.bf16.mxu0 %v1466
      %1530 = vmatpush1.bf16.msra.mxu0 %v1465
      %1531 = vmatprep.subr.bf16.mxu0 %v1468
      %1532 = vmatpush1.bf16.msra.mxu0 %v1467
      %1533 = vmatprep.subr.bf16.mxu0 %v1470
      %1534 = vmatpush1.bf16.msra.mxu0 %v1469
      %1535 = vmatprep.subr.bf16.mxu0 %v1472
      %1536 = vmatpush1.bf16.msra.mxu0 %v1471
      %1537 = vmatprep.subr.bf16.mxu0 %v1474
      %1538 = vmatpush1.bf16.msra.mxu0 %v1473
      %1539 = vmatprep.subr.bf16.mxu0 %v1476
      %1540 = vmatpush1.bf16.msra.mxu0 %v1475
      %1541 = vmatprep.subr.bf16.mxu0 %v1478
      %1542 = vmatpush1.bf16.msra.mxu0 %v1477
      %1543 = vmatprep.subr.bf16.mxu0 %v1480
      %1544 = vmatpush1.bf16.msra.mxu0 %v1479
      %1545 = vmatprep.mubr.bf16.mxu0 %v1282
      %1546 = vmatmul.mubr.bf16.gmra.mrb[0].mxu0 %v1281
      %v1547 = vpop.f32.mrb[0].mxu0
      %v1548 = vadd.f32 0.0, %v1547
      %v1549 = vpop.f32.mrb[0].mxu0
      %v1550 = vadd.f32 0.0, %v1549
      %v1551 = vpop.f32.mrb[0].mxu0
      %v1552 = vadd.f32 0.0, %v1551
      %v1553 = vpop.f32.mrb[0].mxu0
      %v1554 = vadd.f32 0.0, %v1553
      %1555 = vdwg.mxu0
      %v1588 = vunpack.c.l.b16 %v1288
      %v1589 = vunpack.c.h.b16 %v1288
      %v1590 = vunpack.c.l.b16 %v1289
      %v1591 = vunpack.c.h.b16 %v1289
      %v1592 = vunpack.c.l.b16 %v1290
      %v1593 = vunpack.c.h.b16 %v1290
      %v1594 = vunpack.c.l.b16 %v1291
      %v1595 = vunpack.c.h.b16 %v1291
      %v1596 = vunpack.c.l.b16 %v1292
      %v1597 = vunpack.c.h.b16 %v1292
      %v1598 = vunpack.c.l.b16 %v1293
      %v1599 = vunpack.c.h.b16 %v1293
      %v1600 = vunpack.c.l.b16 %v1294
      %v1601 = vunpack.c.h.b16 %v1294
      %v1602 = vunpack.c.l.b16 %v1295
      %v1603 = vunpack.c.h.b16 %v1295
      %v1604 = vunpack.c.l.b16 %v1296
      %v1605 = vunpack.c.h.b16 %v1296
      %v1606 = vunpack.c.l.b16 %v1297
      %v1607 = vunpack.c.h.b16 %v1297
      %v1608 = vunpack.c.l.b16 %v1298
      %v1609 = vunpack.c.h.b16 %v1298
      %v1610 = vunpack.c.l.b16 %v1299
      %v1611 = vunpack.c.h.b16 %v1299
      %v1612 = vunpack.c.l.b16 %v1300
      %v1613 = vunpack.c.h.b16 %v1300
      %v1614 = vunpack.c.l.b16 %v1301
      %v1615 = vunpack.c.h.b16 %v1301
      %v1616 = vunpack.c.l.b16 %v1302
      %v1617 = vunpack.c.h.b16 %v1302
      %v1618 = vunpack.c.l.b16 %v1303
      %v1619 = vunpack.c.h.b16 %v1303
      %v1620 = vunpack.c.l.b16 %v1304
      %v1621 = vunpack.c.h.b16 %v1304
      %v1622 = vunpack.c.l.b16 %v1305
      %v1623 = vunpack.c.h.b16 %v1305
      %v1624 = vunpack.c.l.b16 %v1306
      %v1625 = vunpack.c.h.b16 %v1306
      %v1626 = vunpack.c.l.b16 %v1307
      %v1627 = vunpack.c.h.b16 %v1307
      %v1628 = vunpack.c.l.b16 %v1308
      %v1629 = vunpack.c.h.b16 %v1308
      %v1630 = vunpack.c.l.b16 %v1309
      %v1631 = vunpack.c.h.b16 %v1309
      %v1632 = vunpack.c.l.b16 %v1310
      %v1633 = vunpack.c.h.b16 %v1310
      %v1634 = vunpack.c.l.b16 %v1311
      %v1635 = vunpack.c.h.b16 %v1311
      %v1636 = vunpack.c.l.b16 %v1312
      %v1637 = vunpack.c.h.b16 %v1312
      %v1638 = vunpack.c.l.b16 %v1313
      %v1639 = vunpack.c.h.b16 %v1313
      %v1640 = vunpack.c.l.b16 %v1314
      %v1641 = vunpack.c.h.b16 %v1314
      %v1642 = vunpack.c.l.b16 %v1315
      %v1643 = vunpack.c.h.b16 %v1315
      %v1644 = vunpack.c.l.b16 %v1316
      %v1645 = vunpack.c.h.b16 %v1316
      %v1646 = vunpack.c.l.b16 %v1317
      %v1647 = vunpack.c.h.b16 %v1317
      %v1648 = vunpack.c.l.b16 %v1318
      %v1649 = vunpack.c.h.b16 %v1318
      %v1650 = vunpack.c.l.b16 %v1319
      %v1651 = vunpack.c.h.b16 %v1319
      %v1652 = vpack.c.b16 %v1590, %v1588
      %v1653 = vpack.c.b16 %v1591, %v1589
      %v1654 = vpack.c.b16 %v1594, %v1592
      %v1655 = vpack.c.b16 %v1595, %v1593
      %v1656 = vpack.c.b16 %v1598, %v1596
      %v1657 = vpack.c.b16 %v1599, %v1597
      %v1658 = vpack.c.b16 %v1602, %v1600
      %v1659 = vpack.c.b16 %v1603, %v1601
      %v1660 = vpack.c.b16 %v1606, %v1604
      %v1661 = vpack.c.b16 %v1607, %v1605
      %v1662 = vpack.c.b16 %v1610, %v1608
      %v1663 = vpack.c.b16 %v1611, %v1609
      %v1664 = vpack.c.b16 %v1614, %v1612
      %v1665 = vpack.c.b16 %v1615, %v1613
      %v1666 = vpack.c.b16 %v1618, %v1616
      %v1667 = vpack.c.b16 %v1619, %v1617
      %v1668 = vpack.c.b16 %v1622, %v1620
      %v1669 = vpack.c.b16 %v1623, %v1621
      %v1670 = vpack.c.b16 %v1626, %v1624
      %v1671 = vpack.c.b16 %v1627, %v1625
      %v1672 = vpack.c.b16 %v1630, %v1628
      %v1673 = vpack.c.b16 %v1631, %v1629
      %v1674 = vpack.c.b16 %v1634, %v1632
      %v1675 = vpack.c.b16 %v1635, %v1633
      %v1676 = vpack.c.b16 %v1638, %v1636
      %v1677 = vpack.c.b16 %v1639, %v1637
      %v1678 = vpack.c.b16 %v1642, %v1640
      %v1679 = vpack.c.b16 %v1643, %v1641
      %v1680 = vpack.c.b16 %v1646, %v1644
      %v1681 = vpack.c.b16 %v1647, %v1645
      %v1682 = vpack.c.b16 %v1650, %v1648
      %v1683 = vpack.c.b16 %v1651, %v1649
      %1716 = vmatprep.subr.bf16.mxu0 %v1653
      %1717 = vmatpush1.bf16.msra.mxu0 %v1652
      %1718 = vmatprep.subr.bf16.mxu0 %v1655
      %1719 = vmatpush1.bf16.msra.mxu0 %v1654
      %1720 = vmatprep.subr.bf16.mxu0 %v1657
      %1721 = vmatpush1.bf16.msra.mxu0 %v1656
      %1722 = vmatprep.subr.bf16.mxu0 %v1659
      %1723 = vmatpush1.bf16.msra.mxu0 %v1658
      %1724 = vmatprep.subr.bf16.mxu0 %v1661
      %1725 = vmatpush1.bf16.msra.mxu0 %v1660
      %1726 = vmatprep.subr.bf16.mxu0 %v1663
      %1727 = vmatpush1.bf16.msra.mxu0 %v1662
      %1728 = vmatprep.subr.bf16.mxu0 %v1665
      %1729 = vmatpush1.bf16.msra.mxu0 %v1664
      %1730 = vmatprep.subr.bf16.mxu0 %v1667
      %1731 = vmatpush1.bf16.msra.mxu0 %v1666
      %1732 = vmatprep.subr.bf16.mxu0 %v1669
      %1733 = vmatpush1.bf16.msra.mxu0 %v1668
      %1734 = vmatprep.subr.bf16.mxu0 %v1671
      %1735 = vmatpush1.bf16.msra.mxu0 %v1670
      %1736 = vmatprep.subr.bf16.mxu0 %v1673
      %1737 = vmatpush1.bf16.msra.mxu0 %v1672
      %1738 = vmatprep.subr.bf16.mxu0 %v1675
      %1739 = vmatpush1.bf16.msra.mxu0 %v1674
      %1740 = vmatprep.subr.bf16.mxu0 %v1677
      %1741 = vmatpush1.bf16.msra.mxu0 %v1676
      %1742 = vmatprep.subr.bf16.mxu0 %v1679
      %1743 = vmatpush1.bf16.msra.mxu0 %v1678
      %1744 = vmatprep.subr.bf16.mxu0 %v1681
      %1745 = vmatpush1.bf16.msra.mxu0 %v1680
      %1746 = vmatprep.subr.bf16.mxu0 %v1683
      %1747 = vmatpush1.bf16.msra.mxu0 %v1682
      %1748 = vmatprep.mubr.bf16.mxu0 %v1284
      %1749 = vmatmul.mubr.bf16.gmra.mrb[0].mxu0 %v1283
      %v1750 = vpop.f32.mrb[0].mxu0
      %v1751 = vadd.f32 %v1548, %v1750
      %v1752 = vpop.f32.mrb[0].mxu0
      %v1753 = vadd.f32 %v1550, %v1752
      %v1754 = vpop.f32.mrb[0].mxu0
      %v1755 = vadd.f32 %v1552, %v1754
      %v1756 = vpop.f32.mrb[0].mxu0
      %v1757 = vadd.f32 %v1554, %v1756
      %1758 = vdwg.mxu0
      %s1759 = scalar_lea.vmem %s1, 1280
      %v1760 = vld [vmem:[%s1759] sm:$0xff]
      %v1761 = vld [vmem:[%s1759 + $0x8] sm:$0xff]
      %v1762 = vld [vmem:[%s1759 + $0x10] sm:$0xff]
      %v1763 = vld [vmem:[%s1759 + $0x18] sm:$0xff]
      %v1764 = vld [vmem:[%s1759 + $0x20] sm:$0xff]
      %v1765 = vld [vmem:[%s1759 + $0x28] sm:$0xff]
      %v1766 = vld [vmem:[%s1759 + $0x30] sm:$0xff]
      %v1767 = vld [vmem:[%s1759 + $0x38] sm:$0xff]
      %v1768 = vld [vmem:[%s1759 + $0x40] sm:$0xff]
      %v1769 = vld [vmem:[%s1759 + $0x48] sm:$0xff]
      %v1770 = vld [vmem:[%s1759 + $0x50] sm:$0xff]
      %v1771 = vld [vmem:[%s1759 + $0x58] sm:$0xff]
      %v1772 = vld [vmem:[%s1759 + $0x60] sm:$0xff]
      %v1773 = vld [vmem:[%s1759 + $0x68] sm:$0xff]
      %v1774 = vld [vmem:[%s1759 + $0x70] sm:$0xff]
      %v1775 = vld [vmem:[%s1759 + $0x78] sm:$0xff]
      %v1776 = vld [vmem:[%s1759 + $0x80] sm:$0xff]
      %v1777 = vld [vmem:[%s1759 + $0x88] sm:$0xff]
      %v1778 = vld [vmem:[%s1759 + $0x90] sm:$0xff]
      %v1779 = vld [vmem:[%s1759 + $0x98] sm:$0xff]
      %v1780 = vld [vmem:[%s1759 + $0xa0] sm:$0xff]
      %v1781 = vld [vmem:[%s1759 + $0xa8] sm:$0xff]
      %v1782 = vld [vmem:[%s1759 + $0xb0] sm:$0xff]
      %v1783 = vld [vmem:[%s1759 + $0xb8] sm:$0xff]
      %v1784 = vld [vmem:[%s1759 + $0xc0] sm:$0xff]
      %v1785 = vld [vmem:[%s1759 + $0xc8] sm:$0xff]
      %v1786 = vld [vmem:[%s1759 + $0xd0] sm:$0xff]
      %v1787 = vld [vmem:[%s1759 + $0xd8] sm:$0xff]
      %v1788 = vld [vmem:[%s1759 + $0xe0] sm:$0xff]
      %v1789 = vld [vmem:[%s1759 + $0xe8] sm:$0xff]
      %v1790 = vld [vmem:[%s1759 + $0xf0] sm:$0xff]
      %v1791 = vld [vmem:[%s1759 + $0xf8] sm:$0xff]
      %v1824 = vunpack.c.l.b16 %v1760
      %v1825 = vunpack.c.h.b16 %v1760
      %v1826 = vunpack.c.l.b16 %v1761
      %v1827 = vunpack.c.h.b16 %v1761
      %v1828 = vunpack.c.l.b16 %v1762
      %v1829 = vunpack.c.h.b16 %v1762
      %v1830 = vunpack.c.l.b16 %v1763
      %v1831 = vunpack.c.h.b16 %v1763
      %v1832 = vunpack.c.l.b16 %v1764
      %v1833 = vunpack.c.h.b16 %v1764
      %v1834 = vunpack.c.l.b16 %v1765
      %v1835 = vunpack.c.h.b16 %v1765
      %v1836 = vunpack.c.l.b16 %v1766
      %v1837 = vunpack.c.h.b16 %v1766
      %v1838 = vunpack.c.l.b16 %v1767
      %v1839 = vunpack.c.h.b16 %v1767
      %v1840 = vunpack.c.l.b16 %v1768
      %v1841 = vunpack.c.h.b16 %v1768
      %v1842 = vunpack.c.l.b16 %v1769
      %v1843 = vunpack.c.h.b16 %v1769
      %v1844 = vunpack.c.l.b16 %v1770
      %v1845 = vunpack.c.h.b16 %v1770
      %v1846 = vunpack.c.l.b16 %v1771
      %v1847 = vunpack.c.h.b16 %v1771
      %v1848 = vunpack.c.l.b16 %v1772
      %v1849 = vunpack.c.h.b16 %v1772
      %v1850 = vunpack.c.l.b16 %v1773
      %v1851 = vunpack.c.h.b16 %v1773
      %v1852 = vunpack.c.l.b16 %v1774
      %v1853 = vunpack.c.h.b16 %v1774
      %v1854 = vunpack.c.l.b16 %v1775
      %v1855 = vunpack.c.h.b16 %v1775
      %v1856 = vunpack.c.l.b16 %v1776
      %v1857 = vunpack.c.h.b16 %v1776
      %v1858 = vunpack.c.l.b16 %v1777
      %v1859 = vunpack.c.h.b16 %v1777
      %v1860 = vunpack.c.l.b16 %v1778
      %v1861 = vunpack.c.h.b16 %v1778
      %v1862 = vunpack.c.l.b16 %v1779
      %v1863 = vunpack.c.h.b16 %v1779
      %v1864 = vunpack.c.l.b16 %v1780
      %v1865 = vunpack.c.h.b16 %v1780
      %v1866 = vunpack.c.l.b16 %v1781
      %v1867 = vunpack.c.h.b16 %v1781
      %v1868 = vunpack.c.l.b16 %v1782
      %v1869 = vunpack.c.h.b16 %v1782
      %v1870 = vunpack.c.l.b16 %v1783
      %v1871 = vunpack.c.h.b16 %v1783
      %v1872 = vunpack.c.l.b16 %v1784
      %v1873 = vunpack.c.h.b16 %v1784
      %v1874 = vunpack.c.l.b16 %v1785
      %v1875 = vunpack.c.h.b16 %v1785
      %v1876 = vunpack.c.l.b16 %v1786
      %v1877 = vunpack.c.h.b16 %v1786
      %v1878 = vunpack.c.l.b16 %v1787
      %v1879 = vunpack.c.h.b16 %v1787
      %v1880 = vunpack.c.l.b16 %v1788
      %v1881 = vunpack.c.h.b16 %v1788
      %v1882 = vunpack.c.l.b16 %v1789
      %v1883 = vunpack.c.h.b16 %v1789
      %v1884 = vunpack.c.l.b16 %v1790
      %v1885 = vunpack.c.h.b16 %v1790
      %v1886 = vunpack.c.l.b16 %v1791
      %v1887 = vunpack.c.h.b16 %v1791
      %v1888 = vpack.c.b16 %v1826, %v1824
      %v1889 = vpack.c.b16 %v1827, %v1825
      %v1890 = vpack.c.b16 %v1830, %v1828
      %v1891 = vpack.c.b16 %v1831, %v1829
      %v1892 = vpack.c.b16 %v1834, %v1832
      %v1893 = vpack.c.b16 %v1835, %v1833
      %v1894 = vpack.c.b16 %v1838, %v1836
      %v1895 = vpack.c.b16 %v1839, %v1837
      %v1896 = vpack.c.b16 %v1842, %v1840
      %v1897 = vpack.c.b16 %v1843, %v1841
      %v1898 = vpack.c.b16 %v1846, %v1844
      %v1899 = vpack.c.b16 %v1847, %v1845
      %v1900 = vpack.c.b16 %v1850, %v1848
      %v1901 = vpack.c.b16 %v1851, %v1849
      %v1902 = vpack.c.b16 %v1854, %v1852
      %v1903 = vpack.c.b16 %v1855, %v1853
      %v1904 = vpack.c.b16 %v1858, %v1856
      %v1905 = vpack.c.b16 %v1859, %v1857
      %v1906 = vpack.c.b16 %v1862, %v1860
      %v1907 = vpack.c.b16 %v1863, %v1861
      %v1908 = vpack.c.b16 %v1866, %v1864
      %v1909 = vpack.c.b16 %v1867, %v1865
      %v1910 = vpack.c.b16 %v1870, %v1868
      %v1911 = vpack.c.b16 %v1871, %v1869
      %v1912 = vpack.c.b16 %v1874, %v1872
      %v1913 = vpack.c.b16 %v1875, %v1873
      %v1914 = vpack.c.b16 %v1878, %v1876
      %v1915 = vpack.c.b16 %v1879, %v1877
      %v1916 = vpack.c.b16 %v1882, %v1880
      %v1917 = vpack.c.b16 %v1883, %v1881
      %v1918 = vpack.c.b16 %v1886, %v1884
      %v1919 = vpack.c.b16 %v1887, %v1885
      %1952 = vmatprep.subr.bf16.mxu0 %v1889
      %1953 = vmatpush1.bf16.msra.mxu0 %v1888
      %1954 = vmatprep.subr.bf16.mxu0 %v1891
      %1955 = vmatpush1.bf16.msra.mxu0 %v1890
      %1956 = vmatprep.subr.bf16.mxu0 %v1893
      %1957 = vmatpush1.bf16.msra.mxu0 %v1892
      %1958 = vmatprep.subr.bf16.mxu0 %v1895
      %1959 = vmatpush1.bf16.msra.mxu0 %v1894
      %1960 = vmatprep.subr.bf16.mxu0 %v1897
      %1961 = vmatpush1.bf16.msra.mxu0 %v1896
      %1962 = vmatprep.subr.bf16.mxu0 %v1899
      %1963 = vmatpush1.bf16.msra.mxu0 %v1898
      %1964 = vmatprep.subr.bf16.mxu0 %v1901
      %1965 = vmatpush1.bf16.msra.mxu0 %v1900
      %1966 = vmatprep.subr.bf16.mxu0 %v1903
      %1967 = vmatpush1.bf16.msra.mxu0 %v1902
      %1968 = vmatprep.subr.bf16.mxu0 %v1905
      %1969 = vmatpush1.bf16.msra.mxu0 %v1904
      %1970 = vmatprep.subr.bf16.mxu0 %v1907
      %1971 = vmatpush1.bf16.msra.mxu0 %v1906
      %1972 = vmatprep.subr.bf16.mxu0 %v1909
      %1973 = vmatpush1.bf16.msra.mxu0 %v1908
      %1974 = vmatprep.subr.bf16.mxu0 %v1911
      %1975 = vmatpush1.bf16.msra.mxu0 %v1910
      %1976 = vmatprep.subr.bf16.mxu0 %v1913
      %1977 = vmatpush1.bf16.msra.mxu0 %v1912
      %1978 = vmatprep.subr.bf16.mxu0 %v1915
      %1979 = vmatpush1.bf16.msra.mxu0 %v1914
      %1980 = vmatprep.subr.bf16.mxu0 %v1917
      %1981 = vmatpush1.bf16.msra.mxu0 %v1916
      %1982 = vmatprep.subr.bf16.mxu0 %v1919
      %1983 = vmatpush1.bf16.msra.mxu0 %v1918
      %1984 = vmatprep.mubr.bf16.mxu0 %v1286
      %1985 = vmatmul.mubr.bf16.gmra.mrb[0].mxu0 %v1285
      %v1986 = vpop.f32.mrb[0].mxu0
      %v1987 = vadd.f32 0.0, %v1986
      %v1988 = vpop.f32.mrb[0].mxu0
      %v1989 = vadd.f32 0.0, %v1988
      %v1990 = vpop.f32.mrb[0].mxu0
      %v1991 = vadd.f32 0.0, %v1990
      %v1992 = vpop.f32.mrb[0].mxu0
      %v1993 = vadd.f32 0.0, %v1992
      %1994 = vdwg.mxu0
      %v1995 = vadd.f32 %v1751, %v1987
      %v1996 = vadd.f32 %v1753, %v1989
      %v1997 = vadd.f32 %v1755, %v1991
      %v1998 = vadd.f32 %v1757, %v1993
      %s1999 = scalar_lea.vmem %s2, 2
      %v2000 = vld [vmem:[%s1999] sm:$0x3]
      %v2002 = vlaneseq
      %v2003 = vshrl.u32 %v2002, 7
      %v2004 = vsub.s32 0, %v2003
      %v2005 = vrot.slane %v2000, %v2004
      %v2006 = vlaneseq
      %v2007 = vshrl.u32 %v2006, 7
      %v2008 = vsub.s32 1, %v2007
      %v2009 = vrot.slane %v2000, %v2008
      %v2012 = vadd.f32 %v1995, %v2005
      %v2013 = vadd.f32 %v1996, %v2009
      %v2014 = vadd.f32 %v1997, %v2005
      %v2015 = vadd.f32 %v1998, %v2009
      %v2016 = vmax.f32 %v2012, 0.0
      %v2017 = vmax.f32 %v2013, 0.0
      %v2018 = vmax.f32 %v2014, 0.0
      %v2019 = vmax.f32 %v2015, 0.0
      %v2020 = vpack.c.bf16 %v2018, %v2016
      %v2021 = vpack.c.bf16 %v2019, %v2017
      %s2022 = scalar_lea.vmem %s3, 256
      %v2023 = vld [vmem:[%s2022] sm:$0xff]
      %v2024 = vld [vmem:[%s2022 + $0x8] sm:$0xff]
      %v2025 = vld [vmem:[%s2022 + $0x10] sm:$0xff]
      %v2026 = vld [vmem:[%s2022 + $0x18] sm:$0xff]
      %v2027 = vld [vmem:[%s2022 + $0x20] sm:$0xff]
      %v2028 = vld [vmem:[%s2022 + $0x28] sm:$0xff]
      %v2029 = vld [vmem:[%s2022 + $0x30] sm:$0xff]
      %v2030 = vld [vmem:[%s2022 + $0x38] sm:$0xff]
      %v2031 = vld [vmem:[%s2022 + $0x40] sm:$0xff]
      %v2032 = vld [vmem:[%s2022 + $0x48] sm:$0xff]
      %v2033 = vld [vmem:[%s2022 + $0x50] sm:$0xff]
      %v2034 = vld [vmem:[%s2022 + $0x58] sm:$0xff]
      %v2035 = vld [vmem:[%s2022 + $0x60] sm:$0xff]
      %v2036 = vld [vmem:[%s2022 + $0x68] sm:$0xff]
      %v2037 = vld [vmem:[%s2022 + $0x70] sm:$0xff]
      %v2038 = vld [vmem:[%s2022 + $0x78] sm:$0xff]
      %v2039 = vld [vmem:[%s2022 + $0x80] sm:$0xff]
      %v2040 = vld [vmem:[%s2022 + $0x88] sm:$0xff]
      %v2041 = vld [vmem:[%s2022 + $0x90] sm:$0xff]
      %v2042 = vld [vmem:[%s2022 + $0x98] sm:$0xff]
      %v2043 = vld [vmem:[%s2022 + $0xa0] sm:$0xff]
      %v2044 = vld [vmem:[%s2022 + $0xa8] sm:$0xff]
      %v2045 = vld [vmem:[%s2022 + $0xb0] sm:$0xff]
      %v2046 = vld [vmem:[%s2022 + $0xb8] sm:$0xff]
      %v2047 = vld [vmem:[%s2022 + $0xc0] sm:$0xff]
      %v2048 = vld [vmem:[%s2022 + $0xc8] sm:$0xff]
      %v2049 = vld [vmem:[%s2022 + $0xd0] sm:$0xff]
      %v2050 = vld [vmem:[%s2022 + $0xd8] sm:$0xff]
      %v2051 = vld [vmem:[%s2022 + $0xe0] sm:$0xff]
      %v2052 = vld [vmem:[%s2022 + $0xe8] sm:$0xff]
      %v2053 = vld [vmem:[%s2022 + $0xf0] sm:$0xff]
      %v2054 = vld [vmem:[%s2022 + $0xf8] sm:$0xff]
      %s2055 = scalar_lea.vmem %s4, 2
      %v2056 = vld [vmem:[%s2055] sm:$0x3]
      %v2058 = vlaneseq
      %v2059 = vshrl.u32 %v2058, 7
      %v2060 = vsub.s32 0, %v2059
      %v2061 = vrot.slane %v2056, %v2060
      %v2062 = vlaneseq
      %v2063 = vshrl.u32 %v2062, 7
      %v2064 = vsub.s32 1, %v2063
      %v2065 = vrot.slane %v2056, %v2064
      %v2100 = vunpack.c.l.b16 %v2023
      %v2101 = vunpack.c.h.b16 %v2023
      %v2102 = vunpack.c.l.b16 %v2024
      %v2103 = vunpack.c.h.b16 %v2024
      %v2104 = vunpack.c.l.b16 %v2025
      %v2105 = vunpack.c.h.b16 %v2025
      %v2106 = vunpack.c.l.b16 %v2026
      %v2107 = vunpack.c.h.b16 %v2026
      %v2108 = vunpack.c.l.b16 %v2027
      %v2109 = vunpack.c.h.b16 %v2027
      %v2110 = vunpack.c.l.b16 %v2028
      %v2111 = vunpack.c.h.b16 %v2028
      %v2112 = vunpack.c.l.b16 %v2029
      %v2113 = vunpack.c.h.b16 %v2029
      %v2114 = vunpack.c.l.b16 %v2030
      %v2115 = vunpack.c.h.b16 %v2030
      %v2116 = vunpack.c.l.b16 %v2031
      %v2117 = vunpack.c.h.b16 %v2031
      %v2118 = vunpack.c.l.b16 %v2032
      %v2119 = vunpack.c.h.b16 %v2032
      %v2120 = vunpack.c.l.b16 %v2033
      %v2121 = vunpack.c.h.b16 %v2033
      %v2122 = vunpack.c.l.b16 %v2034
      %v2123 = vunpack.c.h.b16 %v2034
      %v2124 = vunpack.c.l.b16 %v2035
      %v2125 = vunpack.c.h.b16 %v2035
      %v2126 = vunpack.c.l.b16 %v2036
      %v2127 = vunpack.c.h.b16 %v2036
      %v2128 = vunpack.c.l.b16 %v2037
      %v2129 = vunpack.c.h.b16 %v2037
      %v2130 = vunpack.c.l.b16 %v2038
      %v2131 = vunpack.c.h.b16 %v2038
      %v2132 = vunpack.c.l.b16 %v2039
      %v2133 = vunpack.c.h.b16 %v2039
      %v2134 = vunpack.c.l.b16 %v2040
      %v2135 = vunpack.c.h.b16 %v2040
      %v2136 = vunpack.c.l.b16 %v2041
      %v2137 = vunpack.c.h.b16 %v2041
      %v2138 = vunpack.c.l.b16 %v2042
      %v2139 = vunpack.c.h.b16 %v2042
      %v2140 = vunpack.c.l.b16 %v2043
      %v2141 = vunpack.c.h.b16 %v2043
      %v2142 = vunpack.c.l.b16 %v2044
      %v2143 = vunpack.c.h.b16 %v2044
      %v2144 = vunpack.c.l.b16 %v2045
      %v2145 = vunpack.c.h.b16 %v2045
      %v2146 = vunpack.c.l.b16 %v2046
      %v2147 = vunpack.c.h.b16 %v2046
      %v2148 = vunpack.c.l.b16 %v2047
      %v2149 = vunpack.c.h.b16 %v2047
      %v2150 = vunpack.c.l.b16 %v2048
      %v2151 = vunpack.c.h.b16 %v2048
      %v2152 = vunpack.c.l.b16 %v2049
      %v2153 = vunpack.c.h.b16 %v2049
      %v2154 = vunpack.c.l.b16 %v2050
      %v2155 = vunpack.c.h.b16 %v2050
      %v2156 = vunpack.c.l.b16 %v2051
      %v2157 = vunpack.c.h.b16 %v2051
      %v2158 = vunpack.c.l.b16 %v2052
      %v2159 = vunpack.c.h.b16 %v2052
      %v2160 = vunpack.c.l.b16 %v2053
      %v2161 = vunpack.c.h.b16 %v2053
      %v2162 = vunpack.c.l.b16 %v2054
      %v2163 = vunpack.c.h.b16 %v2054
      %v2164 = vpack.c.b16 %v2102, %v2100
      %v2165 = vpack.c.b16 %v2103, %v2101
      %v2166 = vpack.c.b16 %v2106, %v2104
      %v2167 = vpack.c.b16 %v2107, %v2105
      %v2168 = vpack.c.b16 %v2110, %v2108
      %v2169 = vpack.c.b16 %v2111, %v2109
      %v2170 = vpack.c.b16 %v2114, %v2112
      %v2171 = vpack.c.b16 %v2115, %v2113
      %v2172 = vpack.c.b16 %v2118, %v2116
      %v2173 = vpack.c.b16 %v2119, %v2117
      %v2174 = vpack.c.b16 %v2122, %v2120
      %v2175 = vpack.c.b16 %v2123, %v2121
      %v2176 = vpack.c.b16 %v2126, %v2124
      %v2177 = vpack.c.b16 %v2127, %v2125
      %v2178 = vpack.c.b16 %v2130, %v2128
      %v2179 = vpack.c.b16 %v2131, %v2129
      %v2180 = vpack.c.b16 %v2134, %v2132
      %v2181 = vpack.c.b16 %v2135, %v2133
      %v2182 = vpack.c.b16 %v2138, %v2136
      %v2183 = vpack.c.b16 %v2139, %v2137
      %v2184 = vpack.c.b16 %v2142, %v2140
      %v2185 = vpack.c.b16 %v2143, %v2141
      %v2186 = vpack.c.b16 %v2146, %v2144
      %v2187 = vpack.c.b16 %v2147, %v2145
      %v2188 = vpack.c.b16 %v2150, %v2148
      %v2189 = vpack.c.b16 %v2151, %v2149
      %v2190 = vpack.c.b16 %v2154, %v2152
      %v2191 = vpack.c.b16 %v2155, %v2153
      %v2192 = vpack.c.b16 %v2158, %v2156
      %v2193 = vpack.c.b16 %v2159, %v2157
      %v2194 = vpack.c.b16 %v2162, %v2160
      %v2195 = vpack.c.b16 %v2163, %v2161
      %2228 = vmatprep.subr.bf16.mxu0 %v2165
      %2229 = vmatpush1.bf16.msra.mxu0 %v2164
      %2230 = vmatprep.subr.bf16.mxu0 %v2167
      %2231 = vmatpush1.bf16.msra.mxu0 %v2166
      %2232 = vmatprep.subr.bf16.mxu0 %v2169
      %2233 = vmatpush1.bf16.msra.mxu0 %v2168
      %2234 = vmatprep.subr.bf16.mxu0 %v2171
      %2235 = vmatpush1.bf16.msra.mxu0 %v2170
      %2236 = vmatprep.subr.bf16.mxu0 %v2173
      %2237 = vmatpush1.bf16.msra.mxu0 %v2172
      %2238 = vmatprep.subr.bf16.mxu0 %v2175
      %2239 = vmatpush1.bf16.msra.mxu0 %v2174
      %2240 = vmatprep.subr.bf16.mxu0 %v2177
      %2241 = vmatpush1.bf16.msra.mxu0 %v2176
      %2242 = vmatprep.subr.bf16.mxu0 %v2179
      %2243 = vmatpush1.bf16.msra.mxu0 %v2178
      %2244 = vmatprep.subr.bf16.mxu0 %v2181
      %2245 = vmatpush1.bf16.msra.mxu0 %v2180
      %2246 = vmatprep.subr.bf16.mxu0 %v2183
      %2247 = vmatpush1.bf16.msra.mxu0 %v2182
      %2248 = vmatprep.subr.bf16.mxu0 %v2185
      %2249 = vmatpush1.bf16.msra.mxu0 %v2184
      %2250 = vmatprep.subr.bf16.mxu0 %v2187
      %2251 = vmatpush1.bf16.msra.mxu0 %v2186
      %2252 = vmatprep.subr.bf16.mxu0 %v2189
      %2253 = vmatpush1.bf16.msra.mxu0 %v2188
      %2254 = vmatprep.subr.bf16.mxu0 %v2191
      %2255 = vmatpush1.bf16.msra.mxu0 %v2190
      %2256 = vmatprep.subr.bf16.mxu0 %v2193
      %2257 = vmatpush1.bf16.msra.mxu0 %v2192
      %2258 = vmatprep.subr.bf16.mxu0 %v2195
      %2259 = vmatpush1.bf16.msra.mxu0 %v2194
      %2260 = vmatprep.mubr.bf16.mxu0 %v2021
      %2261 = vmatmul.mubr.bf16.gmra.mrb[0].mxu0 %v2020
      %v2262 = vpop.f32.mrb[0].mxu0
      %v2263 = vadd.f32 %v2061, %v2262
      %v2264 = vpop.f32.mrb[0].mxu0
      %v2265 = vadd.f32 %v2065, %v2264
      %v2266 = vpop.f32.mrb[0].mxu0
      %v2267 = vadd.f32 %v2061, %v2266
      %v2268 = vpop.f32.mrb[0].mxu0
      %v2269 = vadd.f32 %v2065, %v2268
      %2270 = vdwg.mxu0
      %v2271 = vmax.f32 %v2263, 0.0
      %v2272 = vmax.f32 %v2265, 0.0
      %v2273 = vmax.f32 %v2267, 0.0
      %v2274 = vmax.f32 %v2269, 0.0
      %v2275 = vadd.f32 %v1249, %v2271
      %v2276 = vadd.f32 %v1250, %v2272
      %v2277 = vadd.f32 %v1251, %v2273
      %v2278 = vadd.f32 %v1252, %v2274
      %v2283 = vrot.slane %v2275, 7
      %v2284 = vrot.slane %v2276, 7
      %v2285 = vrot.slane %v2277, 7
      %v2286 = vsel %vm233, %v2283, %v2285
      %v2287 = vrot.slane %v2278, 7
      %v2288 = vsel %vm233, %v2284, %v2287
      %v2293 = vsel %vm233, 0.0, %v2283
      %v2294 = vsel %vm233, 0.0, %v2284
      %v2295 = vrot.slane %v2275, 1
      %v2296 = vrot.slane %v2277, 1
      %v2297 = vsel %vm246, %v2295, %v2296
      %v2298 = vrot.slane %v2276, 1
      %v2299 = vrot.slane %v2278, 1
      %v2300 = vsel %vm246, %v2298, %v2299
      %v2305 = vsel %vm246, %v2296, 0.0
      %v2306 = vsel %vm246, %v2299, 0.0
      %v2307 = vpack.c.bf16 %v2277, %v2275
      %v2308 = vpack.c.bf16 %v2278, %v2276
      %v2309 = vpack.c.bf16 %v2286, %v2293
      %v2310 = vpack.c.bf16 %v2288, %v2294
      %v2311 = vpack.c.bf16 %v2305, %v2297
      %v2312 = vpack.c.bf16 %v2306, %v2300
      %s2313 = scalar_lea.vmem %s1, 1536
      %v2314 = vld [vmem:[%s2313] sm:$0xff]
      %v2315 = vld [vmem:[%s2313 + $0x8] sm:$0xff]
      %v2316 = vld [vmem:[%s2313 + $0x10] sm:$0xff]
      %v2317 = vld [vmem:[%s2313 + $0x18] sm:$0xff]
      %v2318 = vld [vmem:[%s2313 + $0x20] sm:$0xff]
      %v2319 = vld [vmem:[%s2313 + $0x28] sm:$0xff]
      %v2320 = vld [vmem:[%s2313 + $0x30] sm:$0xff]
      %v2321 = vld [vmem:[%s2313 + $0x38] sm:$0xff]
      %v2322 = vld [vmem:[%s2313 + $0x40] sm:$0xff]
      %v2323 = vld [vmem:[%s2313 + $0x48] sm:$0xff]
      %v2324 = vld [vmem:[%s2313 + $0x50] sm:$0xff]
      %v2325 = vld [vmem:[%s2313 + $0x58] sm:$0xff]
      %v2326 = vld [vmem:[%s2313 + $0x60] sm:$0xff]
      %v2327 = vld [vmem:[%s2313 + $0x68] sm:$0xff]
      %v2328 = vld [vmem:[%s2313 + $0x70] sm:$0xff]
      %v2329 = vld [vmem:[%s2313 + $0x78] sm:$0xff]
      %v2330 = vld [vmem:[%s2313 + $0x80] sm:$0xff]
      %v2331 = vld [vmem:[%s2313 + $0x88] sm:$0xff]
      %v2332 = vld [vmem:[%s2313 + $0x90] sm:$0xff]
      %v2333 = vld [vmem:[%s2313 + $0x98] sm:$0xff]
      %v2334 = vld [vmem:[%s2313 + $0xa0] sm:$0xff]
      %v2335 = vld [vmem:[%s2313 + $0xa8] sm:$0xff]
      %v2336 = vld [vmem:[%s2313 + $0xb0] sm:$0xff]
      %v2337 = vld [vmem:[%s2313 + $0xb8] sm:$0xff]
      %v2338 = vld [vmem:[%s2313 + $0xc0] sm:$0xff]
      %v2339 = vld [vmem:[%s2313 + $0xc8] sm:$0xff]
      %v2340 = vld [vmem:[%s2313 + $0xd0] sm:$0xff]
      %v2341 = vld [vmem:[%s2313 + $0xd8] sm:$0xff]
      %v2342 = vld [vmem:[%s2313 + $0xe0] sm:$0xff]
      %v2343 = vld [vmem:[%s2313 + $0xe8] sm:$0xff]
      %v2344 = vld [vmem:[%s2313 + $0xf0] sm:$0xff]
      %v2345 = vld [vmem:[%s2313 + $0xf8] sm:$0xff]
      %s2346 = scalar_lea.vmem %s1, 1792
      %v2347 = vld [vmem:[%s2346] sm:$0xff]
      %v2348 = vld [vmem:[%s2346 + $0x8] sm:$0xff]
      %v2349 = vld [vmem:[%s2346 + $0x10] sm:$0xff]
      %v2350 = vld [vmem:[%s2346 + $0x18] sm:$0xff]
      %v2351 = vld [vmem:[%s2346 + $0x20] sm:$0xff]
      %v2352 = vld [vmem:[%s2346 + $0x28] sm:$0xff]
      %v2353 = vld [vmem:[%s2346 + $0x30] sm:$0xff]
      %v2354 = vld [vmem:[%s2346 + $0x38] sm:$0xff]
      %v2355 = vld [vmem:[%s2346 + $0x40] sm:$0xff]
      %v2356 = vld [vmem:[%s2346 + $0x48] sm:$0xff]
      %v2357 = vld [vmem:[%s2346 + $0x50] sm:$0xff]
      %v2358 = vld [vmem:[%s2346 + $0x58] sm:$0xff]
      %v2359 = vld [vmem:[%s2346 + $0x60] sm:$0xff]
      %v2360 = vld [vmem:[%s2346 + $0x68] sm:$0xff]
      %v2361 = vld [vmem:[%s2346 + $0x70] sm:$0xff]
      %v2362 = vld [vmem:[%s2346 + $0x78] sm:$0xff]
      %v2363 = vld [vmem:[%s2346 + $0x80] sm:$0xff]
      %v2364 = vld [vmem:[%s2346 + $0x88] sm:$0xff]
      %v2365 = vld [vmem:[%s2346 + $0x90] sm:$0xff]
      %v2366 = vld [vmem:[%s2346 + $0x98] sm:$0xff]
      %v2367 = vld [vmem:[%s2346 + $0xa0] sm:$0xff]
      %v2368 = vld [vmem:[%s2346 + $0xa8] sm:$0xff]
      %v2369 = vld [vmem:[%s2346 + $0xb0] sm:$0xff]
      %v2370 = vld [vmem:[%s2346 + $0xb8] sm:$0xff]
      %v2371 = vld [vmem:[%s2346 + $0xc0] sm:$0xff]
      %v2372 = vld [vmem:[%s2346 + $0xc8] sm:$0xff]
      %v2373 = vld [vmem:[%s2346 + $0xd0] sm:$0xff]
      %v2374 = vld [vmem:[%s2346 + $0xd8] sm:$0xff]
      %v2375 = vld [vmem:[%s2346 + $0xe0] sm:$0xff]
      %v2376 = vld [vmem:[%s2346 + $0xe8] sm:$0xff]
      %v2377 = vld [vmem:[%s2346 + $0xf0] sm:$0xff]
      %v2378 = vld [vmem:[%s2346 + $0xf8] sm:$0xff]
      %v2411 = vunpack.c.l.b16 %v2347
      %v2412 = vunpack.c.h.b16 %v2347
      %v2413 = vunpack.c.l.b16 %v2348
      %v2414 = vunpack.c.h.b16 %v2348
      %v2415 = vunpack.c.l.b16 %v2349
      %v2416 = vunpack.c.h.b16 %v2349
      %v2417 = vunpack.c.l.b16 %v2350
      %v2418 = vunpack.c.h.b16 %v2350
      %v2419 = vunpack.c.l.b16 %v2351
      %v2420 = vunpack.c.h.b16 %v2351
      %v2421 = vunpack.c.l.b16 %v2352
      %v2422 = vunpack.c.h.b16 %v2352
      %v2423 = vunpack.c.l.b16 %v2353
      %v2424 = vunpack.c.h.b16 %v2353
      %v2425 = vunpack.c.l.b16 %v2354
      %v2426 = vunpack.c.h.b16 %v2354
      %v2427 = vunpack.c.l.b16 %v2355
      %v2428 = vunpack.c.h.b16 %v2355
      %v2429 = vunpack.c.l.b16 %v2356
      %v2430 = vunpack.c.h.b16 %v2356
      %v2431 = vunpack.c.l.b16 %v2357
      %v2432 = vunpack.c.h.b16 %v2357
      %v2433 = vunpack.c.l.b16 %v2358
      %v2434 = vunpack.c.h.b16 %v2358
      %v2435 = vunpack.c.l.b16 %v2359
      %v2436 = vunpack.c.h.b16 %v2359
      %v2437 = vunpack.c.l.b16 %v2360
      %v2438 = vunpack.c.h.b16 %v2360
      %v2439 = vunpack.c.l.b16 %v2361
      %v2440 = vunpack.c.h.b16 %v2361
      %v2441 = vunpack.c.l.b16 %v2362
      %v2442 = vunpack.c.h.b16 %v2362
      %v2443 = vunpack.c.l.b16 %v2363
      %v2444 = vunpack.c.h.b16 %v2363
      %v2445 = vunpack.c.l.b16 %v2364
      %v2446 = vunpack.c.h.b16 %v2364
      %v2447 = vunpack.c.l.b16 %v2365
      %v2448 = vunpack.c.h.b16 %v2365
      %v2449 = vunpack.c.l.b16 %v2366
      %v2450 = vunpack.c.h.b16 %v2366
      %v2451 = vunpack.c.l.b16 %v2367
      %v2452 = vunpack.c.h.b16 %v2367
      %v2453 = vunpack.c.l.b16 %v2368
      %v2454 = vunpack.c.h.b16 %v2368
      %v2455 = vunpack.c.l.b16 %v2369
      %v2456 = vunpack.c.h.b16 %v2369
      %v2457 = vunpack.c.l.b16 %v2370
      %v2458 = vunpack.c.h.b16 %v2370
      %v2459 = vunpack.c.l.b16 %v2371
      %v2460 = vunpack.c.h.b16 %v2371
      %v2461 = vunpack.c.l.b16 %v2372
      %v2462 = vunpack.c.h.b16 %v2372
      %v2463 = vunpack.c.l.b16 %v2373
      %v2464 = vunpack.c.h.b16 %v2373
      %v2465 = vunpack.c.l.b16 %v2374
      %v2466 = vunpack.c.h.b16 %v2374
      %v2467 = vunpack.c.l.b16 %v2375
      %v2468 = vunpack.c.h.b16 %v2375
      %v2469 = vunpack.c.l.b16 %v2376
      %v2470 = vunpack.c.h.b16 %v2376
      %v2471 = vunpack.c.l.b16 %v2377
      %v2472 = vunpack.c.h.b16 %v2377
      %v2473 = vunpack.c.l.b16 %v2378
      %v2474 = vunpack.c.h.b16 %v2378
      %v2475 = vpack.c.b16 %v2413, %v2411
      %v2476 = vpack.c.b16 %v2414, %v2412
      %v2477 = vpack.c.b16 %v2417, %v2415
      %v2478 = vpack.c.b16 %v2418, %v2416
      %v2479 = vpack.c.b16 %v2421, %v2419
      %v2480 = vpack.c.b16 %v2422, %v2420
      %v2481 = vpack.c.b16 %v2425, %v2423
      %v2482 = vpack.c.b16 %v2426, %v2424
      %v2483 = vpack.c.b16 %v2429, %v2427
      %v2484 = vpack.c.b16 %v2430, %v2428
      %v2485 = vpack.c.b16 %v2433, %v2431
      %v2486 = vpack.c.b16 %v2434, %v2432
      %v2487 = vpack.c.b16 %v2437, %v2435
      %v2488 = vpack.c.b16 %v2438, %v2436
      %v2489 = vpack.c.b16 %v2441, %v2439
      %v2490 = vpack.c.b16 %v2442, %v2440
      %v2491 = vpack.c.b16 %v2445, %v2443
      %v2492 = vpack.c.b16 %v2446, %v2444
      %v2493 = vpack.c.b16 %v2449, %v2447
      %v2494 = vpack.c.b16 %v2450, %v2448
      %v2495 = vpack.c.b16 %v2453, %v2451
      %v2496 = vpack.c.b16 %v2454, %v2452
      %v2497 = vpack.c.b16 %v2457, %v2455
      %v2498 = vpack.c.b16 %v2458, %v2456
      %v2499 = vpack.c.b16 %v2461, %v2459
      %v2500 = vpack.c.b16 %v2462, %v2460
      %v2501 = vpack.c.b16 %v2465, %v2463
      %v2502 = vpack.c.b16 %v2466, %v2464
      %v2503 = vpack.c.b16 %v2469, %v2467
      %v2504 = vpack.c.b16 %v2470, %v2468
      %v2505 = vpack.c.b16 %v2473, %v2471
      %v2506 = vpack.c.b16 %v2474, %v2472
      %2539 = vmatprep.subr.bf16.mxu0 %v2476
      %2540 = vmatpush1.bf16.msra.mxu0 %v2475
      %2541 = vmatprep.subr.bf16.mxu0 %v2478
      %2542 = vmatpush1.bf16.msra.mxu0 %v2477
      %2543 = vmatprep.subr.bf16.mxu0 %v2480
      %2544 = vmatpush1.bf16.msra.mxu0 %v2479
      %2545 = vmatprep.subr.bf16.mxu0 %v2482
      %2546 = vmatpush1.bf16.msra.mxu0 %v2481
      %2547 = vmatprep.subr.bf16.mxu0 %v2484
      %2548 = vmatpush1.bf16.msra.mxu0 %v2483
      %2549 = vmatprep.subr.bf16.mxu0 %v2486
      %2550 = vmatpush1.bf16.msra.mxu0 %v2485
      %2551 = vmatprep.subr.bf16.mxu0 %v2488
      %2552 = vmatpush1.bf16.msra.mxu0 %v2487
      %2553 = vmatprep.subr.bf16.mxu0 %v2490
      %2554 = vmatpush1.bf16.msra.mxu0 %v2489
      %2555 = vmatprep.subr.bf16.mxu0 %v2492
      %2556 = vmatpush1.bf16.msra.mxu0 %v2491
      %2557 = vmatprep.subr.bf16.mxu0 %v2494
      %2558 = vmatpush1.bf16.msra.mxu0 %v2493
      %2559 = vmatprep.subr.bf16.mxu0 %v2496
      %2560 = vmatpush1.bf16.msra.mxu0 %v2495
      %2561 = vmatprep.subr.bf16.mxu0 %v2498
      %2562 = vmatpush1.bf16.msra.mxu0 %v2497
      %2563 = vmatprep.subr.bf16.mxu0 %v2500
      %2564 = vmatpush1.bf16.msra.mxu0 %v2499
      %2565 = vmatprep.subr.bf16.mxu0 %v2502
      %2566 = vmatpush1.bf16.msra.mxu0 %v2501
      %2567 = vmatprep.subr.bf16.mxu0 %v2504
      %2568 = vmatpush1.bf16.msra.mxu0 %v2503
      %2569 = vmatprep.subr.bf16.mxu0 %v2506
      %2570 = vmatpush1.bf16.msra.mxu0 %v2505
      %2571 = vmatprep.mubr.bf16.mxu0 %v2308
      %2572 = vmatmul.mubr.bf16.gmra.mrb[0].mxu0 %v2307
      %v2573 = vpop.f32.mrb[0].mxu0
      %v2574 = vadd.f32 0.0, %v2573
      %v2575 = vpop.f32.mrb[0].mxu0
      %v2576 = vadd.f32 0.0, %v2575
      %v2577 = vpop.f32.mrb[0].mxu0
      %v2578 = vadd.f32 0.0, %v2577
      %v2579 = vpop.f32.mrb[0].mxu0
      %v2580 = vadd.f32 0.0, %v2579
      %2581 = vdwg.mxu0
      %v2614 = vunpack.c.l.b16 %v2314
      %v2615 = vunpack.c.h.b16 %v2314
      %v2616 = vunpack.c.l.b16 %v2315
      %v2617 = vunpack.c.h.b16 %v2315
      %v2618 = vunpack.c.l.b16 %v2316
      %v2619 = vunpack.c.h.b16 %v2316
      %v2620 = vunpack.c.l.b16 %v2317
      %v2621 = vunpack.c.h.b16 %v2317
      %v2622 = vunpack.c.l.b16 %v2318
      %v2623 = vunpack.c.h.b16 %v2318
      %v2624 = vunpack.c.l.b16 %v2319
      %v2625 = vunpack.c.h.b16 %v2319
      %v2626 = vunpack.c.l.b16 %v2320
      %v2627 = vunpack.c.h.b16 %v2320
      %v2628 = vunpack.c.l.b16 %v2321
      %v2629 = vunpack.c.h.b16 %v2321
      %v2630 = vunpack.c.l.b16 %v2322
      %v2631 = vunpack.c.h.b16 %v2322
      %v2632 = vunpack.c.l.b16 %v2323
      %v2633 = vunpack.c.h.b16 %v2323
      %v2634 = vunpack.c.l.b16 %v2324
      %v2635 = vunpack.c.h.b16 %v2324
      %v2636 = vunpack.c.l.b16 %v2325
      %v2637 = vunpack.c.h.b16 %v2325
      %v2638 = vunpack.c.l.b16 %v2326
      %v2639 = vunpack.c.h.b16 %v2326
      %v2640 = vunpack.c.l.b16 %v2327
      %v2641 = vunpack.c.h.b16 %v2327
      %v2642 = vunpack.c.l.b16 %v2328
      %v2643 = vunpack.c.h.b16 %v2328
      %v2644 = vunpack.c.l.b16 %v2329
      %v2645 = vunpack.c.h.b16 %v2329
      %v2646 = vunpack.c.l.b16 %v2330
      %v2647 = vunpack.c.h.b16 %v2330
      %v2648 = vunpack.c.l.b16 %v2331
      %v2649 = vunpack.c.h.b16 %v2331
      %v2650 = vunpack.c.l.b16 %v2332
      %v2651 = vunpack.c.h.b16 %v2332
      %v2652 = vunpack.c.l.b16 %v2333
      %v2653 = vunpack.c.h.b16 %v2333
      %v2654 = vunpack.c.l.b16 %v2334
      %v2655 = vunpack.c.h.b16 %v2334
      %v2656 = vunpack.c.l.b16 %v2335
      %v2657 = vunpack.c.h.b16 %v2335
      %v2658 = vunpack.c.l.b16 %v2336
      %v2659 = vunpack.c.h.b16 %v2336
      %v2660 = vunpack.c.l.b16 %v2337
      %v2661 = vunpack.c.h.b16 %v2337
      %v2662 = vunpack.c.l.b16 %v2338
      %v2663 = vunpack.c.h.b16 %v2338
      %v2664 = vunpack.c.l.b16 %v2339
      %v2665 = vunpack.c.h.b16 %v2339
      %v2666 = vunpack.c.l.b16 %v2340
      %v2667 = vunpack.c.h.b16 %v2340
      %v2668 = vunpack.c.l.b16 %v2341
      %v2669 = vunpack.c.h.b16 %v2341
      %v2670 = vunpack.c.l.b16 %v2342
      %v2671 = vunpack.c.h.b16 %v2342
      %v2672 = vunpack.c.l.b16 %v2343
      %v2673 = vunpack.c.h.b16 %v2343
      %v2674 = vunpack.c.l.b16 %v2344
      %v2675 = vunpack.c.h.b16 %v2344
      %v2676 = vunpack.c.l.b16 %v2345
      %v2677 = vunpack.c.h.b16 %v2345
      %v2678 = vpack.c.b16 %v2616, %v2614
      %v2679 = vpack.c.b16 %v2617, %v2615
      %v2680 = vpack.c.b16 %v2620, %v2618
      %v2681 = vpack.c.b16 %v2621, %v2619
      %v2682 = vpack.c.b16 %v2624, %v2622
      %v2683 = vpack.c.b16 %v2625, %v2623
      %v2684 = vpack.c.b16 %v2628, %v2626
      %v2685 = vpack.c.b16 %v2629, %v2627
      %v2686 = vpack.c.b16 %v2632, %v2630
      %v2687 = vpack.c.b16 %v2633, %v2631
      %v2688 = vpack.c.b16 %v2636, %v2634
      %v2689 = vpack.c.b16 %v2637, %v2635
      %v2690 = vpack.c.b16 %v2640, %v2638
      %v2691 = vpack.c.b16 %v2641, %v2639
      %v2692 = vpack.c.b16 %v2644, %v2642
      %v2693 = vpack.c.b16 %v2645, %v2643
      %v2694 = vpack.c.b16 %v2648, %v2646
      %v2695 = vpack.c.b16 %v2649, %v2647
      %v2696 = vpack.c.b16 %v2652, %v2650
      %v2697 = vpack.c.b16 %v2653, %v2651
      %v2698 = vpack.c.b16 %v2656, %v2654
      %v2699 = vpack.c.b16 %v2657, %v2655
      %v2700 = vpack.c.b16 %v2660, %v2658
      %v2701 = vpack.c.b16 %v2661, %v2659
      %v2702 = vpack.c.b16 %v2664, %v2662
      %v2703 = vpack.c.b16 %v2665, %v2663
      %v2704 = vpack.c.b16 %v2668, %v2666
      %v2705 = vpack.c.b16 %v2669, %v2667
      %v2706 = vpack.c.b16 %v2672, %v2670
      %v2707 = vpack.c.b16 %v2673, %v2671
      %v2708 = vpack.c.b16 %v2676, %v2674
      %v2709 = vpack.c.b16 %v2677, %v2675
      %2742 = vmatprep.subr.bf16.mxu0 %v2679
      %2743 = vmatpush1.bf16.msra.mxu0 %v2678
      %2744 = vmatprep.subr.bf16.mxu0 %v2681
      %2745 = vmatpush1.bf16.msra.mxu0 %v2680
      %2746 = vmatprep.subr.bf16.mxu0 %v2683
      %2747 = vmatpush1.bf16.msra.mxu0 %v2682
      %2748 = vmatprep.subr.bf16.mxu0 %v2685
      %2749 = vmatpush1.bf16.msra.mxu0 %v2684
      %2750 = vmatprep.subr.bf16.mxu0 %v2687
      %2751 = vmatpush1.bf16.msra.mxu0 %v2686
      %2752 = vmatprep.subr.bf16.mxu0 %v2689
      %2753 = vmatpush1.bf16.msra.mxu0 %v2688
      %2754 = vmatprep.subr.bf16.mxu0 %v2691
      %2755 = vmatpush1.bf16.msra.mxu0 %v2690
      %2756 = vmatprep.subr.bf16.mxu0 %v2693
      %2757 = vmatpush1.bf16.msra.mxu0 %v2692
      %2758 = vmatprep.subr.bf16.mxu0 %v2695
      %2759 = vmatpush1.bf16.msra.mxu0 %v2694
      %2760 = vmatprep.subr.bf16.mxu0 %v2697
      %2761 = vmatpush1.bf16.msra.mxu0 %v2696
      %2762 = vmatprep.subr.bf16.mxu0 %v2699
      %2763 = vmatpush1.bf16.msra.mxu0 %v2698
      %2764 = vmatprep.subr.bf16.mxu0 %v2701
      %2765 = vmatpush1.bf16.msra.mxu0 %v2700
      %2766 = vmatprep.subr.bf16.mxu0 %v2703
      %2767 = vmatpush1.bf16.msra.mxu0 %v2702
      %2768 = vmatprep.subr.bf16.mxu0 %v2705
      %2769 = vmatpush1.bf16.msra.mxu0 %v2704
      %2770 = vmatprep.subr.bf16.mxu0 %v2707
      %2771 = vmatpush1.bf16.msra.mxu0 %v2706
      %2772 = vmatprep.subr.bf16.mxu0 %v2709
      %2773 = vmatpush1.bf16.msra.mxu0 %v2708
      %2774 = vmatprep.mubr.bf16.mxu0 %v2310
      %2775 = vmatmul.mubr.bf16.gmra.mrb[0].mxu0 %v2309
      %v2776 = vpop.f32.mrb[0].mxu0
      %v2777 = vadd.f32 %v2574, %v2776
      %v2778 = vpop.f32.mrb[0].mxu0
      %v2779 = vadd.f32 %v2576, %v2778
      %v2780 = vpop.f32.mrb[0].mxu0
      %v2781 = vadd.f32 %v2578, %v2780
      %v2782 = vpop.f32.mrb[0].mxu0
      %v2783 = vadd.f32 %v2580, %v2782
      %2784 = vdwg.mxu0
      %s2785 = scalar_lea.vmem %s1, 2048
      %v2786 = vld [vmem:[%s2785] sm:$0xff]
      %v2787 = vld [vmem:[%s2785 + $0x8] sm:$0xff]
      %v2788 = vld [vmem:[%s2785 + $0x10] sm:$0xff]
      %v2789 = vld [vmem:[%s2785 + $0x18] sm:$0xff]
      %v2790 = vld [vmem:[%s2785 + $0x20] sm:$0xff]
      %v2791 = vld [vmem:[%s2785 + $0x28] sm:$0xff]
      %v2792 = vld [vmem:[%s2785 + $0x30] sm:$0xff]
      %v2793 = vld [vmem:[%s2785 + $0x38] sm:$0xff]
      %v2794 = vld [vmem:[%s2785 + $0x40] sm:$0xff]
      %v2795 = vld [vmem:[%s2785 + $0x48] sm:$0xff]
      %v2796 = vld [vmem:[%s2785 + $0x50] sm:$0xff]
      %v2797 = vld [vmem:[%s2785 + $0x58] sm:$0xff]
      %v2798 = vld [vmem:[%s2785 + $0x60] sm:$0xff]
      %v2799 = vld [vmem:[%s2785 + $0x68] sm:$0xff]
      %v2800 = vld [vmem:[%s2785 + $0x70] sm:$0xff]
      %v2801 = vld [vmem:[%s2785 + $0x78] sm:$0xff]
      %v2802 = vld [vmem:[%s2785 + $0x80] sm:$0xff]
      %v2803 = vld [vmem:[%s2785 + $0x88] sm:$0xff]
      %v2804 = vld [vmem:[%s2785 + $0x90] sm:$0xff]
      %v2805 = vld [vmem:[%s2785 + $0x98] sm:$0xff]
      %v2806 = vld [vmem:[%s2785 + $0xa0] sm:$0xff]
      %v2807 = vld [vmem:[%s2785 + $0xa8] sm:$0xff]
      %v2808 = vld [vmem:[%s2785 + $0xb0] sm:$0xff]
      %v2809 = vld [vmem:[%s2785 + $0xb8] sm:$0xff]
      %v2810 = vld [vmem:[%s2785 + $0xc0] sm:$0xff]
      %v2811 = vld [vmem:[%s2785 + $0xc8] sm:$0xff]
      %v2812 = vld [vmem:[%s2785 + $0xd0] sm:$0xff]
      %v2813 = vld [vmem:[%s2785 + $0xd8] sm:$0xff]
      %v2814 = vld [vmem:[%s2785 + $0xe0] sm:$0xff]
      %v2815 = vld [vmem:[%s2785 + $0xe8] sm:$0xff]
      %v2816 = vld [vmem:[%s2785 + $0xf0] sm:$0xff]
      %v2817 = vld [vmem:[%s2785 + $0xf8] sm:$0xff]
      %v2850 = vunpack.c.l.b16 %v2786
      %v2851 = vunpack.c.h.b16 %v2786
      %v2852 = vunpack.c.l.b16 %v2787
      %v2853 = vunpack.c.h.b16 %v2787
      %v2854 = vunpack.c.l.b16 %v2788
      %v2855 = vunpack.c.h.b16 %v2788
      %v2856 = vunpack.c.l.b16 %v2789
      %v2857 = vunpack.c.h.b16 %v2789
      %v2858 = vunpack.c.l.b16 %v2790
      %v2859 = vunpack.c.h.b16 %v2790
      %v2860 = vunpack.c.l.b16 %v2791
      %v2861 = vunpack.c.h.b16 %v2791
      %v2862 = vunpack.c.l.b16 %v2792
      %v2863 = vunpack.c.h.b16 %v2792
      %v2864 = vunpack.c.l.b16 %v2793
      %v2865 = vunpack.c.h.b16 %v2793
      %v2866 = vunpack.c.l.b16 %v2794
      %v2867 = vunpack.c.h.b16 %v2794
      %v2868 = vunpack.c.l.b16 %v2795
      %v2869 = vunpack.c.h.b16 %v2795
      %v2870 = vunpack.c.l.b16 %v2796
      %v2871 = vunpack.c.h.b16 %v2796
      %v2872 = vunpack.c.l.b16 %v2797
      %v2873 = vunpack.c.h.b16 %v2797
      %v2874 = vunpack.c.l.b16 %v2798
      %v2875 = vunpack.c.h.b16 %v2798
      %v2876 = vunpack.c.l.b16 %v2799
      %v2877 = vunpack.c.h.b16 %v2799
      %v2878 = vunpack.c.l.b16 %v2800
      %v2879 = vunpack.c.h.b16 %v2800
      %v2880 = vunpack.c.l.b16 %v2801
      %v2881 = vunpack.c.h.b16 %v2801
      %v2882 = vunpack.c.l.b16 %v2802
      %v2883 = vunpack.c.h.b16 %v2802
      %v2884 = vunpack.c.l.b16 %v2803
      %v2885 = vunpack.c.h.b16 %v2803
      %v2886 = vunpack.c.l.b16 %v2804
      %v2887 = vunpack.c.h.b16 %v2804
      %v2888 = vunpack.c.l.b16 %v2805
      %v2889 = vunpack.c.h.b16 %v2805
      %v2890 = vunpack.c.l.b16 %v2806
      %v2891 = vunpack.c.h.b16 %v2806
      %v2892 = vunpack.c.l.b16 %v2807
      %v2893 = vunpack.c.h.b16 %v2807
      %v2894 = vunpack.c.l.b16 %v2808
      %v2895 = vunpack.c.h.b16 %v2808
      %v2896 = vunpack.c.l.b16 %v2809
      %v2897 = vunpack.c.h.b16 %v2809
      %v2898 = vunpack.c.l.b16 %v2810
      %v2899 = vunpack.c.h.b16 %v2810
      %v2900 = vunpack.c.l.b16 %v2811
      %v2901 = vunpack.c.h.b16 %v2811
      %v2902 = vunpack.c.l.b16 %v2812
      %v2903 = vunpack.c.h.b16 %v2812
      %v2904 = vunpack.c.l.b16 %v2813
      %v2905 = vunpack.c.h.b16 %v2813
      %v2906 = vunpack.c.l.b16 %v2814
      %v2907 = vunpack.c.h.b16 %v2814
      %v2908 = vunpack.c.l.b16 %v2815
      %v2909 = vunpack.c.h.b16 %v2815
      %v2910 = vunpack.c.l.b16 %v2816
      %v2911 = vunpack.c.h.b16 %v2816
      %v2912 = vunpack.c.l.b16 %v2817
      %v2913 = vunpack.c.h.b16 %v2817
      %v2914 = vpack.c.b16 %v2852, %v2850
      %v2915 = vpack.c.b16 %v2853, %v2851
      %v2916 = vpack.c.b16 %v2856, %v2854
      %v2917 = vpack.c.b16 %v2857, %v2855
      %v2918 = vpack.c.b16 %v2860, %v2858
      %v2919 = vpack.c.b16 %v2861, %v2859
      %v2920 = vpack.c.b16 %v2864, %v2862
      %v2921 = vpack.c.b16 %v2865, %v2863
      %v2922 = vpack.c.b16 %v2868, %v2866
      %v2923 = vpack.c.b16 %v2869, %v2867
      %v2924 = vpack.c.b16 %v2872, %v2870
      %v2925 = vpack.c.b16 %v2873, %v2871
      %v2926 = vpack.c.b16 %v2876, %v2874
      %v2927 = vpack.c.b16 %v2877, %v2875
      %v2928 = vpack.c.b16 %v2880, %v2878
      %v2929 = vpack.c.b16 %v2881, %v2879
      %v2930 = vpack.c.b16 %v2884, %v2882
      %v2931 = vpack.c.b16 %v2885, %v2883
      %v2932 = vpack.c.b16 %v2888, %v2886
      %v2933 = vpack.c.b16 %v2889, %v2887
      %v2934 = vpack.c.b16 %v2892, %v2890
      %v2935 = vpack.c.b16 %v2893, %v2891
      %v2936 = vpack.c.b16 %v2896, %v2894
      %v2937 = vpack.c.b16 %v2897, %v2895
      %v2938 = vpack.c.b16 %v2900, %v2898
      %v2939 = vpack.c.b16 %v2901, %v2899
      %v2940 = vpack.c.b16 %v2904, %v2902
      %v2941 = vpack.c.b16 %v2905, %v2903
      %v2942 = vpack.c.b16 %v2908, %v2906
      %v2943 = vpack.c.b16 %v2909, %v2907
      %v2944 = vpack.c.b16 %v2912, %v2910
      %v2945 = vpack.c.b16 %v2913, %v2911
      %2978 = vmatprep.subr.bf16.mxu0 %v2915
      %2979 = vmatpush1.bf16.msra.mxu0 %v2914
      %2980 = vmatprep.subr.bf16.mxu0 %v2917
      %2981 = vmatpush1.bf16.msra.mxu0 %v2916
      %2982 = vmatprep.subr.bf16.mxu0 %v2919
      %2983 = vmatpush1.bf16.msra.mxu0 %v2918
      %2984 = vmatprep.subr.bf16.mxu0 %v2921
      %2985 = vmatpush1.bf16.msra.mxu0 %v2920
      %2986 = vmatprep.subr.bf16.mxu0 %v2923
      %2987 = vmatpush1.bf16.msra.mxu0 %v2922
      %2988 = vmatprep.subr.bf16.mxu0 %v2925
      %2989 = vmatpush1.bf16.msra.mxu0 %v2924
      %2990 = vmatprep.subr.bf16.mxu0 %v2927
      %2991 = vmatpush1.bf16.msra.mxu0 %v2926
      %2992 = vmatprep.subr.bf16.mxu0 %v2929
      %2993 = vmatpush1.bf16.msra.mxu0 %v2928
      %2994 = vmatprep.subr.bf16.mxu0 %v2931
      %2995 = vmatpush1.bf16.msra.mxu0 %v2930
      %2996 = vmatprep.subr.bf16.mxu0 %v2933
      %2997 = vmatpush1.bf16.msra.mxu0 %v2932
      %2998 = vmatprep.subr.bf16.mxu0 %v2935
      %2999 = vmatpush1.bf16.msra.mxu0 %v2934
      %3000 = vmatprep.subr.bf16.mxu0 %v2937
      %3001 = vmatpush1.bf16.msra.mxu0 %v2936
      %3002 = vmatprep.subr.bf16.mxu0 %v2939
      %3003 = vmatpush1.bf16.msra.mxu0 %v2938
      %3004 = vmatprep.subr.bf16.mxu0 %v2941
      %3005 = vmatpush1.bf16.msra.mxu0 %v2940
      %3006 = vmatprep.subr.bf16.mxu0 %v2943
      %3007 = vmatpush1.bf16.msra.mxu0 %v2942
      %3008 = vmatprep.subr.bf16.mxu0 %v2945
      %3009 = vmatpush1.bf16.msra.mxu0 %v2944
      %3010 = vmatprep.mubr.bf16.mxu0 %v2312
      %3011 = vmatmul.mubr.bf16.gmra.mrb[0].mxu0 %v2311
      %v3012 = vpop.f32.mrb[0].mxu0
      %v3013 = vadd.f32 0.0, %v3012
      %v3014 = vpop.f32.mrb[0].mxu0
      %v3015 = vadd.f32 0.0, %v3014
      %v3016 = vpop.f32.mrb[0].mxu0
      %v3017 = vadd.f32 0.0, %v3016
      %v3018 = vpop.f32.mrb[0].mxu0
      %v3019 = vadd.f32 0.0, %v3018
      %3020 = vdwg.mxu0
      %v3021 = vadd.f32 %v2777, %v3013
      %v3022 = vadd.f32 %v2779, %v3015
      %v3023 = vadd.f32 %v2781, %v3017
      %v3024 = vadd.f32 %v2783, %v3019
      %s3025 = scalar_lea.vmem %s2, 4
      %v3026 = vld [vmem:[%s3025] sm:$0x3]
      %v3028 = vlaneseq
      %v3029 = vshrl.u32 %v3028, 7
      %v3030 = vsub.s32 0, %v3029
      %v3031 = vrot.slane %v3026, %v3030
      %v3032 = vlaneseq
      %v3033 = vshrl.u32 %v3032, 7
      %v3034 = vsub.s32 1, %v3033
      %v3035 = vrot.slane %v3026, %v3034
      %v3038 = vadd.f32 %v3021, %v3031
      %v3039 = vadd.f32 %v3022, %v3035
      %v3040 = vadd.f32 %v3023, %v3031
      %v3041 = vadd.f32 %v3024, %v3035
      %v3042 = vmax.f32 %v3038, 0.0
      %v3043 = vmax.f32 %v3039, 0.0
      %v3044 = vmax.f32 %v3040, 0.0
      %v3045 = vmax.f32 %v3041, 0.0
      %v3046 = vpack.c.bf16 %v3044, %v3042
      %v3047 = vpack.c.bf16 %v3045, %v3043
      %s3048 = scalar_lea.vmem %s3, 512
      %v3049 = vld [vmem:[%s3048] sm:$0xff]
      %v3050 = vld [vmem:[%s3048 + $0x8] sm:$0xff]
      %v3051 = vld [vmem:[%s3048 + $0x10] sm:$0xff]
      %v3052 = vld [vmem:[%s3048 + $0x18] sm:$0xff]
      %v3053 = vld [vmem:[%s3048 + $0x20] sm:$0xff]
      %v3054 = vld [vmem:[%s3048 + $0x28] sm:$0xff]
      %v3055 = vld [vmem:[%s3048 + $0x30] sm:$0xff]
      %v3056 = vld [vmem:[%s3048 + $0x38] sm:$0xff]
      %v3057 = vld [vmem:[%s3048 + $0x40] sm:$0xff]
      %v3058 = vld [vmem:[%s3048 + $0x48] sm:$0xff]
      %v3059 = vld [vmem:[%s3048 + $0x50] sm:$0xff]
      %v3060 = vld [vmem:[%s3048 + $0x58] sm:$0xff]
      %v3061 = vld [vmem:[%s3048 + $0x60] sm:$0xff]
      %v3062 = vld [vmem:[%s3048 + $0x68] sm:$0xff]
      %v3063 = vld [vmem:[%s3048 + $0x70] sm:$0xff]
      %v3064 = vld [vmem:[%s3048 + $0x78] sm:$0xff]
      %v3065 = vld [vmem:[%s3048 + $0x80] sm:$0xff]
      %v3066 = vld [vmem:[%s3048 + $0x88] sm:$0xff]
      %v3067 = vld [vmem:[%s3048 + $0x90] sm:$0xff]
      %v3068 = vld [vmem:[%s3048 + $0x98] sm:$0xff]
      %v3069 = vld [vmem:[%s3048 + $0xa0] sm:$0xff]
      %v3070 = vld [vmem:[%s3048 + $0xa8] sm:$0xff]
      %v3071 = vld [vmem:[%s3048 + $0xb0] sm:$0xff]
      %v3072 = vld [vmem:[%s3048 + $0xb8] sm:$0xff]
      %v3073 = vld [vmem:[%s3048 + $0xc0] sm:$0xff]
      %v3074 = vld [vmem:[%s3048 + $0xc8] sm:$0xff]
      %v3075 = vld [vmem:[%s3048 + $0xd0] sm:$0xff]
      %v3076 = vld [vmem:[%s3048 + $0xd8] sm:$0xff]
      %v3077 = vld [vmem:[%s3048 + $0xe0] sm:$0xff]
      %v3078 = vld [vmem:[%s3048 + $0xe8] sm:$0xff]
      %v3079 = vld [vmem:[%s3048 + $0xf0] sm:$0xff]
      %v3080 = vld [vmem:[%s3048 + $0xf8] sm:$0xff]
      %s3081 = scalar_lea.vmem %s4, 4
      %v3082 = vld [vmem:[%s3081] sm:$0x3]
      %v3084 = vlaneseq
      %v3085 = vshrl.u32 %v3084, 7
      %v3086 = vsub.s32 0, %v3085
      %v3087 = vrot.slane %v3082, %v3086
      %v3088 = vlaneseq
      %v3089 = vshrl.u32 %v3088, 7
      %v3090 = vsub.s32 1, %v3089
      %v3091 = vrot.slane %v3082, %v3090
      %v3126 = vunpack.c.l.b16 %v3049
      %v3127 = vunpack.c.h.b16 %v3049
      %v3128 = vunpack.c.l.b16 %v3050
      %v3129 = vunpack.c.h.b16 %v3050
      %v3130 = vunpack.c.l.b16 %v3051
      %v3131 = vunpack.c.h.b16 %v3051
      %v3132 = vunpack.c.l.b16 %v3052
      %v3133 = vunpack.c.h.b16 %v3052
      %v3134 = vunpack.c.l.b16 %v3053
      %v3135 = vunpack.c.h.b16 %v3053
      %v3136 = vunpack.c.l.b16 %v3054
      %v3137 = vunpack.c.h.b16 %v3054
      %v3138 = vunpack.c.l.b16 %v3055
      %v3139 = vunpack.c.h.b16 %v3055
      %v3140 = vunpack.c.l.b16 %v3056
      %v3141 = vunpack.c.h.b16 %v3056
      %v3142 = vunpack.c.l.b16 %v3057
      %v3143 = vunpack.c.h.b16 %v3057
      %v3144 = vunpack.c.l.b16 %v3058
      %v3145 = vunpack.c.h.b16 %v3058
      %v3146 = vunpack.c.l.b16 %v3059
      %v3147 = vunpack.c.h.b16 %v3059
      %v3148 = vunpack.c.l.b16 %v3060
      %v3149 = vunpack.c.h.b16 %v3060
      %v3150 = vunpack.c.l.b16 %v3061
      %v3151 = vunpack.c.h.b16 %v3061
      %v3152 = vunpack.c.l.b16 %v3062
      %v3153 = vunpack.c.h.b16 %v3062
      %v3154 = vunpack.c.l.b16 %v3063
      %v3155 = vunpack.c.h.b16 %v3063
      %v3156 = vunpack.c.l.b16 %v3064
      %v3157 = vunpack.c.h.b16 %v3064
      %v3158 = vunpack.c.l.b16 %v3065
      %v3159 = vunpack.c.h.b16 %v3065
      %v3160 = vunpack.c.l.b16 %v3066
      %v3161 = vunpack.c.h.b16 %v3066
      %v3162 = vunpack.c.l.b16 %v3067
      %v3163 = vunpack.c.h.b16 %v3067
      %v3164 = vunpack.c.l.b16 %v3068
      %v3165 = vunpack.c.h.b16 %v3068
      %v3166 = vunpack.c.l.b16 %v3069
      %v3167 = vunpack.c.h.b16 %v3069
      %v3168 = vunpack.c.l.b16 %v3070
      %v3169 = vunpack.c.h.b16 %v3070
      %v3170 = vunpack.c.l.b16 %v3071
      %v3171 = vunpack.c.h.b16 %v3071
      %v3172 = vunpack.c.l.b16 %v3072
      %v3173 = vunpack.c.h.b16 %v3072
      %v3174 = vunpack.c.l.b16 %v3073
      %v3175 = vunpack.c.h.b16 %v3073
      %v3176 = vunpack.c.l.b16 %v3074
      %v3177 = vunpack.c.h.b16 %v3074
      %v3178 = vunpack.c.l.b16 %v3075
      %v3179 = vunpack.c.h.b16 %v3075
      %v3180 = vunpack.c.l.b16 %v3076
      %v3181 = vunpack.c.h.b16 %v3076
      %v3182 = vunpack.c.l.b16 %v3077
      %v3183 = vunpack.c.h.b16 %v3077
      %v3184 = vunpack.c.l.b16 %v3078
      %v3185 = vunpack.c.h.b16 %v3078
      %v3186 = vunpack.c.l.b16 %v3079
      %v3187 = vunpack.c.h.b16 %v3079
      %v3188 = vunpack.c.l.b16 %v3080
      %v3189 = vunpack.c.h.b16 %v3080
      %v3190 = vpack.c.b16 %v3128, %v3126
      %v3191 = vpack.c.b16 %v3129, %v3127
      %v3192 = vpack.c.b16 %v3132, %v3130
      %v3193 = vpack.c.b16 %v3133, %v3131
      %v3194 = vpack.c.b16 %v3136, %v3134
      %v3195 = vpack.c.b16 %v3137, %v3135
      %v3196 = vpack.c.b16 %v3140, %v3138
      %v3197 = vpack.c.b16 %v3141, %v3139
      %v3198 = vpack.c.b16 %v3144, %v3142
      %v3199 = vpack.c.b16 %v3145, %v3143
      %v3200 = vpack.c.b16 %v3148, %v3146
      %v3201 = vpack.c.b16 %v3149, %v3147
      %v3202 = vpack.c.b16 %v3152, %v3150
      %v3203 = vpack.c.b16 %v3153, %v3151
      %v3204 = vpack.c.b16 %v3156, %v3154
      %v3205 = vpack.c.b16 %v3157, %v3155
      %v3206 = vpack.c.b16 %v3160, %v3158
      %v3207 = vpack.c.b16 %v3161, %v3159
      %v3208 = vpack.c.b16 %v3164, %v3162
      %v3209 = vpack.c.b16 %v3165, %v3163
      %v3210 = vpack.c.b16 %v3168, %v3166
      %v3211 = vpack.c.b16 %v3169, %v3167
      %v3212 = vpack.c.b16 %v3172, %v3170
      %v3213 = vpack.c.b16 %v3173, %v3171
      %v3214 = vpack.c.b16 %v3176, %v3174
      %v3215 = vpack.c.b16 %v3177, %v3175
      %v3216 = vpack.c.b16 %v3180, %v3178
      %v3217 = vpack.c.b16 %v3181, %v3179
      %v3218 = vpack.c.b16 %v3184, %v3182
      %v3219 = vpack.c.b16 %v3185, %v3183
      %v3220 = vpack.c.b16 %v3188, %v3186
      %v3221 = vpack.c.b16 %v3189, %v3187
      %3254 = vmatprep.subr.bf16.mxu0 %v3191
      %3255 = vmatpush1.bf16.msra.mxu0 %v3190
      %3256 = vmatprep.subr.bf16.mxu0 %v3193
      %3257 = vmatpush1.bf16.msra.mxu0 %v3192
      %3258 = vmatprep.subr.bf16.mxu0 %v3195
      %3259 = vmatpush1.bf16.msra.mxu0 %v3194
      %3260 = vmatprep.subr.bf16.mxu0 %v3197
      %3261 = vmatpush1.bf16.msra.mxu0 %v3196
      %3262 = vmatprep.subr.bf16.mxu0 %v3199
      %3263 = vmatpush1.bf16.msra.mxu0 %v3198
      %3264 = vmatprep.subr.bf16.mxu0 %v3201
      %3265 = vmatpush1.bf16.msra.mxu0 %v3200
      %3266 = vmatprep.subr.bf16.mxu0 %v3203
      %3267 = vmatpush1.bf16.msra.mxu0 %v3202
      %3268 = vmatprep.subr.bf16.mxu0 %v3205
      %3269 = vmatpush1.bf16.msra.mxu0 %v3204
      %3270 = vmatprep.subr.bf16.mxu0 %v3207
      %3271 = vmatpush1.bf16.msra.mxu0 %v3206
      %3272 = vmatprep.subr.bf16.mxu0 %v3209
      %3273 = vmatpush1.bf16.msra.mxu0 %v3208
      %3274 = vmatprep.subr.bf16.mxu0 %v3211
      %3275 = vmatpush1.bf16.msra.mxu0 %v3210
      %3276 = vmatprep.subr.bf16.mxu0 %v3213
      %3277 = vmatpush1.bf16.msra.mxu0 %v3212
      %3278 = vmatprep.subr.bf16.mxu0 %v3215
      %3279 = vmatpush1.bf16.msra.mxu0 %v3214
      %3280 = vmatprep.subr.bf16.mxu0 %v3217
      %3281 = vmatpush1.bf16.msra.mxu0 %v3216
      %3282 = vmatprep.subr.bf16.mxu0 %v3219
      %3283 = vmatpush1.bf16.msra.mxu0 %v3218
      %3284 = vmatprep.subr.bf16.mxu0 %v3221
      %3285 = vmatpush1.bf16.msra.mxu0 %v3220
      %3286 = vmatprep.mubr.bf16.mxu0 %v3047
      %3287 = vmatmul.mubr.bf16.gmra.mrb[0].mxu0 %v3046
      %v3288 = vpop.f32.mrb[0].mxu0
      %v3289 = vadd.f32 %v3087, %v3288
      %v3290 = vpop.f32.mrb[0].mxu0
      %v3291 = vadd.f32 %v3091, %v3290
      %v3292 = vpop.f32.mrb[0].mxu0
      %v3293 = vadd.f32 %v3087, %v3292
      %v3294 = vpop.f32.mrb[0].mxu0
      %v3295 = vadd.f32 %v3091, %v3294
      %3296 = vdwg.mxu0
      %v3297 = vmax.f32 %v3289, 0.0
      %v3298 = vmax.f32 %v3291, 0.0
      %v3299 = vmax.f32 %v3293, 0.0
      %v3300 = vmax.f32 %v3295, 0.0
      %v3301 = vadd.f32 %v2275, %v3297
      %v3302 = vadd.f32 %v2276, %v3298
      %v3303 = vadd.f32 %v2277, %v3299
      %v3304 = vadd.f32 %v2278, %v3300
      %3305 = vst [vmem:[%s224] sm:$0xff] %v3301
      %3306 = vst [vmem:[%s224 + $0x8] sm:$0xff] %v3302
      %3307 = vst [vmem:[%s224 + $0x10] sm:$0xff] %v3303
      %3308 = vst [vmem:[%s224 + $0x18] sm:$0xff] %v3304
      %p3309 = scmp.lt.s32.totalorder %s16, 1
      %s3310 = scalar_select %p3309, %s16, 1
      %s3311 = smul.addr %s3310, 4
      %s3312 = smul.addr %s3311, 8
      %s3313 = scalar_lea.vmem %s5, %s3312
      // Predicated region
      $region41: #{_lambda_.1} parent=39 // pred_check
        %p3314 = pneg %p144
      $region42: #{_lambda_.1} parent=39 // pred_check_branch
        %3316 = sbr.rel (%p3314) target = $region44
      $region43: #{_lambda_.1} parent=39 // pred_region
        _
      $region44: #{_lambda_.1} parent=39 // pred_fallthru
        _
    $region40: #{_lambda_.1} parent=5 // pred_fallthru
      _
    %p3317 = scmp.le.s32.totalorder 2, %s11
    // Predicated region
    $region45: #{_lambda_.1} parent=5 // pred_check
      %p3318 = pneg %p3317
    $region46: #{_lambda_.1} parent=5 // pred_check_branch
      %3320 = sbr.rel (%p3318) target = $region48
    $region47: #{_lambda_.1} parent=5 // pred_region
      %s3321 = ssub.s32 %s11, 2
      // Predicated region
      $region49: #{_lambda_.1} parent=47 // pred_check
        %p3322 = pneg %p150
      $region50: #{_lambda_.1} parent=47 // pred_check_branch
        %3324 = sbr.rel (%p3322) target = $region52
      $region51: #{_lambda_.1} parent=47 // pred_region
        %p3325 = scmp.lt.s32.totalorder %s17, 1
        %s3326 = scalar_select %p3325, %s17, 1
        %s3327 = smul.addr %s3326, 4
        %s3328 = smul.addr %s3327, 8
        %s3329 = scalar_lea.vmem %s5, %s3328
      $region52: #{_lambda_.1} parent=47 // pred_fallthru
        _
    $region48: #{_lambda_.1} parent=5 // pred_fallthru
      _
  $region6: #{_lambda_.1} parent=0 // loop_footer
    %s15 = sadd.s32 1, %s11
  $region7: #{_lambda_.1} parent=0 // loop_footer_branch
    %10 = sbr.rel target = $region3
  $region8: #{_lambda_.1} parent=0 // loop_exit
    _

</llo_original>
